<compile_context>
chip_gen: v7x
topology: tpu7x:2x2x1
jax: 0.10.0
libtpu: 0.0.40
codegen_flags: <defaults>
</compile_context>

<pallas_src>
import functools

import numpy as np
import jax
import jax.numpy as jnp
from jax.experimental import pallas as pl
from jax.experimental.pallas import tpu as pltpu


def value_network_kernel(x_ref, w_emb_ref, b_emb_ref, w_i_ref, w_h_ref,
                         b_ih_ref, b_hn_ref, w_out_ref, b_out_ref,
                         out_ref, g_ref, h_ref, *, seq_len, batch):
    """All operands VMEM-resident (single grid point, small test shapes).

    x_ref:     (S*B, V)   time-major flattened logits (row = t*B + b)
    w_emb_ref: (V, H), b_emb_ref: (1, H)
    w_i_ref:   (H, 3H)    input->gate weights, gate order (r | z | n)
    w_h_ref:   (H, 3H)    hidden->gate weights, gate order (r | z | n)
    b_ih_ref:  (1, 3H)    [b_ir + b_hr | b_iz + b_hz | b_in]  (folded into precompute)
    b_hn_ref:  (1, H)     hidden bias of the n gate (must stay inside r*(...))
    w_out_ref: (1, H), b_out_ref: (1, 1)
    out_ref:   (S*B, 1)   values (time-major rows)
    g_ref:     (S*B, 3H)  scratch: precomputed input-side gate terms
    h_ref:     (S*B, H)   scratch: hidden-state history
    """
    B = batch
    H = w_emb_ref.shape[1]

    # ---- Hoisted batched matmuls: all timesteps at once (one big MXU pass each) ----
    e = jnp.dot(x_ref[...], w_emb_ref[...],
                preferred_element_type=jnp.float32) + b_emb_ref[...]        # (S*B, H)
    g_ref[...] = jnp.dot(e, w_i_ref[...],
                         preferred_element_type=jnp.float32) + b_ih_ref[...]  # (S*B, 3H)

    # Small H: load the fused hidden weight once.  (For large H, index w_h_ref
    # directly inside the dot to avoid holding 3*H*H f32 in vregs.)
    w_h = w_h_ref[...]
    # Hoist the n-gate hidden-bias broadcast out of the loop (JAX does not CSE it).
    b_hn = jnp.broadcast_to(b_hn_ref[...], (B, H))

    # ---- Serial GRU recurrence: one fused (B,H)@(H,3H) matmul per step ----
    # Fully unrolled static loop (S is small/fixed); use lax.fori_loop(unroll=k)
    # for large S instead.
    h = jnp.zeros((B, H), dtype=jnp.float32)
    for t in range(seq_len):
        g_t = g_ref[pl.ds(t * B, B), :]                                      # (B, 3H)
        gh = jnp.dot(h, w_h, preferred_element_type=jnp.float32)             # (B, 3H)
        r = jax.nn.sigmoid(g_t[:, :H] + gh[:, :H])
        z = jax.nn.sigmoid(g_t[:, H:2 * H] + gh[:, H:2 * H])
        n = jnp.tanh(g_t[:, 2 * H:] + r * (gh[:, 2 * H:] + b_hn))
        h = (1.0 - z) * n + z * h
        h_ref[pl.ds(t * B, B), :] = h

    # ---- Post-loop value head: VPU multiply + lane reduction, one bulk store ----
    # (avoids S tiny N=1 MXU matmuls and S masked width-1 lane stores)
    v = jnp.sum(h_ref[...] * w_out_ref[...], axis=-1, keepdims=True) + b_out_ref[...]
    out_ref[...] = v


def value_network_forward(thought_logits, params):
    """thought_logits: (B, S, V) float32 -> values (B, S) float32."""
    B, S, V = thought_logits.shape
    H = params["w_emb"].shape[1]

    # One-time layout prep outside the kernel:
    #   time-major 2-D input rows, concatenated gate weights (r|z|n),
    #   folded biases, row-form output weight.
    x2 = jnp.transpose(thought_logits, (1, 0, 2)).reshape(S * B, V)
    w_i_cat = jnp.concatenate(
        [params["w_i"][0], params["w_i"][1], params["w_i"][2]], axis=1)      # (H, 3H)
    w_h_cat = jnp.concatenate(
        [params["w_h"][0], params["w_h"][1], params["w_h"][2]], axis=1)      # (H, 3H)
    b_ih = jnp.concatenate(
        [params["b_i"][0] + params["b_h"][0],
         params["b_i"][1] + params["b_h"][1],
         params["b_i"][2]], axis=-1)                                         # (1, 3H)
    b_hn = params["b_h"][2]                                                  # (1, H)
    w_out_row = params["w_out"].reshape(1, H)                                # (1, H)
    b_out = params["b_out"]                                                  # (1, 1)

    fused_inputs = (x2, params["w_emb"], params["b_emb"], w_i_cat, w_h_cat,
                    b_ih, b_hn, w_out_row, b_out)

    # Size the scoped-VMEM limit from the actual footprint (2x margin, 16 MiB floor
    # which is within every generation's default / physical capacity).
    scratch_elems = S * B * (3 * H) + S * B * H + S * B
    footprint = 4 * (sum(int(np.prod(a.shape)) for a in fused_inputs) + scratch_elems)
    vmem_limit = int(max(2 * footprint, 16 * 1024 * 1024))

    # NOTE: at production vocab sizes the (S*B, V) input should be tiled with a
    # gridded BlockSpec (V as an "arbitrary" reduction axis, weights with constant
    # index_maps) instead of whole-array VMEM residency; bf16 matmul operands and a
    # "parallel" batch grid axis (v7x megacore) are further shape-dependent wins.
    vmem = pl.BlockSpec(memory_space=pltpu.MemorySpace.VMEM)
    out = pl.pallas_call(
        functools.partial(value_network_kernel, seq_len=S, batch=B),
        out_shape=jax.ShapeDtypeStruct((S * B, 1), jnp.float32),
        in_specs=[vmem] * len(fused_inputs),
        out_specs=vmem,
        scratch_shapes=[pltpu.VMEM((S * B, 3 * H), jnp.float32),
                        pltpu.VMEM((S * B, H), jnp.float32)],
        compiler_params=pltpu.CompilerParams(vmem_limit_bytes=vmem_limit),
    )(*fused_inputs)

    return out.reshape(S, B).T                                               # (B, S)


def init_params(key, vocab_size, hidden_dim):
    """Deterministic synthetic init (shapes match nn.Linear / nn.GRU params)."""
    ks = jax.random.split(key, 8)
    s_e = 1.0 / np.sqrt(vocab_size)
    s_h = 1.0 / np.sqrt(hidden_dim)
    u = lambda k, shape, s: jax.random.uniform(k, shape, jnp.float32, -s, s)
    return {
        "w_emb": u(ks[0], (vocab_size, hidden_dim), s_e),
        "b_emb": u(ks[1], (1, hidden_dim), s_e),
        "w_i": u(ks[2], (3, hidden_dim, hidden_dim), s_h),   # gates (r, z, n)
        "b_i": u(ks[3], (3, 1, hidden_dim), s_h),
        "w_h": u(ks[4], (3, hidden_dim, hidden_dim), s_h),
        "b_h": u(ks[5], (3, 1, hidden_dim), s_h),
        "w_out": u(ks[6], (hidden_dim, 1), s_h),
        "b_out": u(ks[7], (1, 1), s_h),
    }


def reference_forward(x, p):
    """Pure-JAX reference with identical GRU semantics (PyTorch gate order r, z, n)."""
    emb = jnp.einsum("bsv,vh->bsh", x, p["w_emb"]) + p["b_emb"][0]

    def cell(h, e_t):
        r = jax.nn.sigmoid(e_t @ p["w_i"][0] + p["b_i"][0, 0]
                           + h @ p["w_h"][0] + p["b_h"][0, 0])
        z = jax.nn.sigmoid(e_t @ p["w_i"][1] + p["b_i"][1, 0]
                           + h @ p["w_h"][1] + p["b_h"][1, 0])
        n = jnp.tanh(e_t @ p["w_i"][2] + p["b_i"][2, 0]
                     + r * (h @ p["w_h"][2] + p["b_h"][2, 0]))
        h_new = (1.0 - z) * n + z * h
        return h_new, h_new

    h0 = jnp.zeros((x.shape[0], p["w_emb"].shape[1]), jnp.float32)
    _, hs = jax.lax.scan(cell, h0, jnp.transpose(emb, (1, 0, 2)))  # (S, B, H)
    hs = jnp.transpose(hs, (1, 0, 2))                              # (B, S, H)
    return jnp.einsum("bsh,ho->bso", hs, p["w_out"])[..., 0] + p["b_out"][0, 0]


if __name__ == "__main__":
    B, S, V, H = 2, 8, 32, 32  # batch, seq, vocab_size, hidden_dim

    key = jax.random.PRNGKey(0)
    k_x, k_p = jax.random.split(key)
    thought_logits = jax.random.normal(k_x, (B, S, V), jnp.float32)
    params = init_params(k_p, V, H)

    values = value_network_forward(thought_logits, params)
    values = jax.block_until_ready(values)

    ref = jax.block_until_ready(reference_forward(thought_logits, params))
    assert values.shape == (B, S)
    assert np.allclose(np.asarray(values), np.asarray(ref), rtol=1e-5, atol=2e-5), (
        "Pallas kernel does not match JAX reference")

    print("KERNEL_OK")
</pallas_src>

<mosaic_0001>
module attributes {stable_mosaic.version = 11 : i64} {
  func.func @value_network_kernel(%arg0: memref<16x32xf32, #tpu.memory_space<vmem>>, %arg1: memref<32x32xf32, #tpu.memory_space<vmem>>, %arg2: memref<1x32xf32, #tpu.memory_space<vmem>>, %arg3: memref<32x96xf32, #tpu.memory_space<vmem>>, %arg4: memref<32x96xf32, #tpu.memory_space<vmem>>, %arg5: memref<1x96xf32, #tpu.memory_space<vmem>>, %arg6: memref<1x32xf32, #tpu.memory_space<vmem>>, %arg7: memref<1x32xf32, #tpu.memory_space<vmem>>, %arg8: memref<1x1xf32, #tpu.memory_space<vmem>>, %arg9: memref<16x1xf32, #tpu.memory_space<vmem>>, %arg10: memref<16x96xf32, #tpu.memory_space<vmem>>, %arg11: memref<16x32xf32, #tpu.memory_space<vmem>>) attributes {dimension_semantics = [], scalar_prefetch = 0 : i64, scratch_operands = 2 : i64, tpu.core_type = #tpu.core_type<tc>} {
    %c0 = arith.constant 0 : index
    %c0_0 = arith.constant 0 : index
    %0 = vector.load %arg0[%c0, %c0_0] : memref<16x32xf32, #tpu.memory_space<vmem>>, vector<16x32xf32>
    %c0_1 = arith.constant 0 : index
    %c0_2 = arith.constant 0 : index
    %1 = vector.load %arg1[%c0_1, %c0_2] : memref<32x32xf32, #tpu.memory_space<vmem>>, vector<32x32xf32>
    %cst = arith.constant dense<0.000000e+00> : vector<16x32xf32>
    %2 = tpu.matmul %0, %1, %cst {dimension_numbers = #tpu.dot_dimension_numbers<[1], [0], [0], [1], [0, 0, 1, 1], [], []>} : vector<16x32xf32>, vector<32x32xf32>, vector<16x32xf32> -> vector<16x32xf32>
    %c0_3 = arith.constant 0 : index
    %c0_4 = arith.constant 0 : index
    %3 = vector.load %arg2[%c0_3, %c0_4] : memref<1x32xf32, #tpu.memory_space<vmem>>, vector<1x32xf32>
    %4 = vector.broadcast %3 : vector<1x32xf32> to vector<16x32xf32>
    %5 = arith.addf %2, %4 : vector<16x32xf32>
    %c0_5 = arith.constant 0 : index
    %c0_6 = arith.constant 0 : index
    %6 = vector.load %arg3[%c0_5, %c0_6] : memref<32x96xf32, #tpu.memory_space<vmem>>, vector<32x96xf32>
    %cst_7 = arith.constant dense<0.000000e+00> : vector<16x96xf32>
    %7 = tpu.matmul %5, %6, %cst_7 {dimension_numbers = #tpu.dot_dimension_numbers<[1], [0], [0], [1], [0, 0, 1, 1], [], []>} : vector<16x32xf32>, vector<32x96xf32>, vector<16x96xf32> -> vector<16x96xf32>
    %c0_8 = arith.constant 0 : index
    %c0_9 = arith.constant 0 : index
    %8 = vector.load %arg5[%c0_8, %c0_9] : memref<1x96xf32, #tpu.memory_space<vmem>>, vector<1x96xf32>
    %9 = vector.broadcast %8 : vector<1x96xf32> to vector<16x96xf32>
    %10 = arith.addf %7, %9 : vector<16x96xf32>
    %c0_10 = arith.constant 0 : index
    %c0_11 = arith.constant 0 : index
    %11 = vector.load %arg10[%c0_10, %c0_11] : memref<16x96xf32, #tpu.memory_space<vmem>>, vector<16x96xf32>
    tpu.vector_store %arg10[%c0_10, %c0_11], %10 {strides = array<i32>} : memref<16x96xf32, #tpu.memory_space<vmem>>, vector<16x96xf32>,
    %c0_12 = arith.constant 0 : index
    %c0_13 = arith.constant 0 : index
    %12 = vector.load %arg4[%c0_12, %c0_13] : memref<32x96xf32, #tpu.memory_space<vmem>>, vector<32x96xf32>
    %c0_14 = arith.constant 0 : index
    %c0_15 = arith.constant 0 : index
    %13 = vector.load %arg6[%c0_14, %c0_15] : memref<1x32xf32, #tpu.memory_space<vmem>>, vector<1x32xf32>
    %14 = vector.shape_cast %13 : vector<1x32xf32> to vector<1x32xf32>
    %15 = vector.broadcast %14 : vector<1x32xf32> to vector<2x32xf32>
    %cst_16 = arith.constant 0.000000e+00 : f32
    %16 = vector.broadcast %cst_16 : f32 to vector<2x32xf32>
    %c0_17 = arith.constant 0 : index
    %c0_18 = arith.constant 0 : index
    %17 = vector.load %arg10[%c0_17, %c0_18] : memref<16x96xf32, #tpu.memory_space<vmem>>, vector<2x96xf32>
    %cst_19 = arith.constant dense<0.000000e+00> : vector<2x96xf32>
    %18 = tpu.matmul %16, %12, %cst_19 {dimension_numbers = #tpu.dot_dimension_numbers<[1], [0], [0], [1], [0, 0, 1, 1], [], []>} : vector<2x32xf32>, vector<32x96xf32>, vector<2x96xf32> -> vector<2x96xf32>
    %19 = vector.extract_strided_slice %17 {offsets = [0, 0], sizes = [2, 32], strides = [1, 1]} : vector<2x96xf32> to vector<2x32xf32>
    %20 = vector.extract_strided_slice %18 {offsets = [0, 0], sizes = [2, 32], strides = [1, 1]} : vector<2x96xf32> to vector<2x32xf32>
    %21 = arith.addf %19, %20 : vector<2x32xf32>
    %22 = arith.negf %21 : vector<2x32xf32>
    %23 = math.exp %22 : vector<2x32xf32>
    %cst_20 = arith.constant 1.000000e+00 : f32
    %24 = vector.broadcast %cst_20 : f32 to vector<2x32xf32>
    %25 = arith.addf %24, %23 : vector<2x32xf32>
    %26 = arith.divf %24, %25 : vector<2x32xf32>
    %27 = vector.extract_strided_slice %17 {offsets = [0, 32], sizes = [2, 32], strides = [1, 1]} : vector<2x96xf32> to vector<2x32xf32>
    %28 = vector.extract_strided_slice %18 {offsets = [0, 32], sizes = [2, 32], strides = [1, 1]} : vector<2x96xf32> to vector<2x32xf32>
    %29 = arith.addf %27, %28 : vector<2x32xf32>
    %30 = arith.negf %29 : vector<2x32xf32>
    %31 = math.exp %30 : vector<2x32xf32>
    %cst_21 = arith.constant 1.000000e+00 : f32
    %32 = vector.broadcast %cst_21 : f32 to vector<2x32xf32>
    %33 = arith.addf %32, %31 : vector<2x32xf32>
    %34 = arith.divf %32, %33 : vector<2x32xf32>
    %35 = vector.extract_strided_slice %17 {offsets = [0, 64], sizes = [2, 32], strides = [1, 1]} : vector<2x96xf32> to vector<2x32xf32>
    %36 = vector.extract_strided_slice %18 {offsets = [0, 64], sizes = [2, 32], strides = [1, 1]} : vector<2x96xf32> to vector<2x32xf32>
    %37 = arith.addf %36, %15 : vector<2x32xf32>
    %38 = arith.mulf %26, %37 : vector<2x32xf32>
    %39 = arith.addf %35, %38 : vector<2x32xf32>
    %40 = math.tanh %39 : vector<2x32xf32>
    %cst_22 = arith.constant 1.000000e+00 : f32
    %41 = vector.broadcast %cst_22 : f32 to vector<2x32xf32>
    %42 = arith.subf %41, %34 : vector<2x32xf32>
    %43 = arith.mulf %42, %40 : vector<2x32xf32>
    %44 = arith.mulf %34, %16 : vector<2x32xf32>
    %45 = arith.addf %43, %44 : vector<2x32xf32>
    %c0_23 = arith.constant 0 : index
    %c0_24 = arith.constant 0 : index
    %46 = vector.load %arg11[%c0_23, %c0_24] : memref<16x32xf32, #tpu.memory_space<vmem>>, vector<2x32xf32>
    tpu.vector_store %arg11[%c0_23, %c0_24], %45 {strides = array<i32>} : memref<16x32xf32, #tpu.memory_space<vmem>>, vector<2x32xf32>,
    %c2 = arith.constant 2 : index
    %c0_25 = arith.constant 0 : index
    %47 = vector.load %arg10[%c2, %c0_25] : memref<16x96xf32, #tpu.memory_space<vmem>>, vector<2x96xf32>
    %cst_26 = arith.constant dense<0.000000e+00> : vector<2x96xf32>
    %48 = tpu.matmul %45, %12, %cst_26 {dimension_numbers = #tpu.dot_dimension_numbers<[1], [0], [0], [1], [0, 0, 1, 1], [], []>} : vector<2x32xf32>, vector<32x96xf32>, vector<2x96xf32> -> vector<2x96xf32>
    %49 = vector.extract_strided_slice %47 {offsets = [0, 0], sizes = [2, 32], strides = [1, 1]} : vector<2x96xf32> to vector<2x32xf32>
    %50 = vector.extract_strided_slice %48 {offsets = [0, 0], sizes = [2, 32], strides = [1, 1]} : vector<2x96xf32> to vector<2x32xf32>
    %51 = arith.addf %49, %50 : vector<2x32xf32>
    %52 = arith.negf %51 : vector<2x32xf32>
    %53 = math.exp %52 : vector<2x32xf32>
    %cst_27 = arith.constant 1.000000e+00 : f32
    %54 = vector.broadcast %cst_27 : f32 to vector<2x32xf32>
    %55 = arith.addf %54, %53 : vector<2x32xf32>
    %56 = arith.divf %54, %55 : vector<2x32xf32>
    %57 = vector.extract_strided_slice %47 {offsets = [0, 32], sizes = [2, 32], strides = [1, 1]} : vector<2x96xf32> to vector<2x32xf32>
    %58 = vector.extract_strided_slice %48 {offsets = [0, 32], sizes = [2, 32], strides = [1, 1]} : vector<2x96xf32> to vector<2x32xf32>
    %59 = arith.addf %57, %58 : vector<2x32xf32>
    %60 = arith.negf %59 : vector<2x32xf32>
    %61 = math.exp %60 : vector<2x32xf32>
    %cst_28 = arith.constant 1.000000e+00 : f32
    %62 = vector.broadcast %cst_28 : f32 to vector<2x32xf32>
    %63 = arith.addf %62, %61 : vector<2x32xf32>
    %64 = arith.divf %62, %63 : vector<2x32xf32>
    %65 = vector.extract_strided_slice %47 {offsets = [0, 64], sizes = [2, 32], strides = [1, 1]} : vector<2x96xf32> to vector<2x32xf32>
    %66 = vector.extract_strided_slice %48 {offsets = [0, 64], sizes = [2, 32], strides = [1, 1]} : vector<2x96xf32> to vector<2x32xf32>
    %67 = arith.addf %66, %15 : vector<2x32xf32>
    %68 = arith.mulf %56, %67 : vector<2x32xf32>
    %69 = arith.addf %65, %68 : vector<2x32xf32>
    %70 = math.tanh %69 : vector<2x32xf32>
    %cst_29 = arith.constant 1.000000e+00 : f32
    %71 = vector.broadcast %cst_29 : f32 to vector<2x32xf32>
    %72 = arith.subf %71, %64 : vector<2x32xf32>
    %73 = arith.mulf %72, %70 : vector<2x32xf32>
    %74 = arith.mulf %64, %45 : vector<2x32xf32>
    %75 = arith.addf %73, %74 : vector<2x32xf32>
    %c2_30 = arith.constant 2 : index
    %c0_31 = arith.constant 0 : index
    %76 = vector.load %arg11[%c2_30, %c0_31] : memref<16x32xf32, #tpu.memory_space<vmem>>, vector<2x32xf32>
    tpu.vector_store %arg11[%c2_30, %c0_31], %75 {strides = array<i32>} : memref<16x32xf32, #tpu.memory_space<vmem>>, vector<2x32xf32>,
    %c4 = arith.constant 4 : index
    %c0_32 = arith.constant 0 : index
    %77 = vector.load %arg10[%c4, %c0_32] : memref<16x96xf32, #tpu.memory_space<vmem>>, vector<2x96xf32>
    %cst_33 = arith.constant dense<0.000000e+00> : vector<2x96xf32>
    %78 = tpu.matmul %75, %12, %cst_33 {dimension_numbers = #tpu.dot_dimension_numbers<[1], [0], [0], [1], [0, 0, 1, 1], [], []>} : vector<2x32xf32>, vector<32x96xf32>, vector<2x96xf32> -> vector<2x96xf32>
    %79 = vector.extract_strided_slice %77 {offsets = [0, 0], sizes = [2, 32], strides = [1, 1]} : vector<2x96xf32> to vector<2x32xf32>
    %80 = vector.extract_strided_slice %78 {offsets = [0, 0], sizes = [2, 32], strides = [1, 1]} : vector<2x96xf32> to vector<2x32xf32>
    %81 = arith.addf %79, %80 : vector<2x32xf32>
    %82 = arith.negf %81 : vector<2x32xf32>
    %83 = math.exp %82 : vector<2x32xf32>
    %cst_34 = arith.constant 1.000000e+00 : f32
    %84 = vector.broadcast %cst_34 : f32 to vector<2x32xf32>
    %85 = arith.addf %84, %83 : vector<2x32xf32>
    %86 = arith.divf %84, %85 : vector<2x32xf32>
    %87 = vector.extract_strided_slice %77 {offsets = [0, 32], sizes = [2, 32], strides = [1, 1]} : vector<2x96xf32> to vector<2x32xf32>
    %88 = vector.extract_strided_slice %78 {offsets = [0, 32], sizes = [2, 32], strides = [1, 1]} : vector<2x96xf32> to vector<2x32xf32>
    %89 = arith.addf %87, %88 : vector<2x32xf32>
    %90 = arith.negf %89 : vector<2x32xf32>
    %91 = math.exp %90 : vector<2x32xf32>
    %cst_35 = arith.constant 1.000000e+00 : f32
    %92 = vector.broadcast %cst_35 : f32 to vector<2x32xf32>
    %93 = arith.addf %92, %91 : vector<2x32xf32>
    %94 = arith.divf %92, %93 : vector<2x32xf32>
    %95 = vector.extract_strided_slice %77 {offsets = [0, 64], sizes = [2, 32], strides = [1, 1]} : vector<2x96xf32> to vector<2x32xf32>
    %96 = vector.extract_strided_slice %78 {offsets = [0, 64], sizes = [2, 32], strides = [1, 1]} : vector<2x96xf32> to vector<2x32xf32>
    %97 = arith.addf %96, %15 : vector<2x32xf32>
    %98 = arith.mulf %86, %97 : vector<2x32xf32>
    %99 = arith.addf %95, %98 : vector<2x32xf32>
    %100 = math.tanh %99 : vector<2x32xf32>
    %cst_36 = arith.constant 1.000000e+00 : f32
    %101 = vector.broadcast %cst_36 : f32 to vector<2x32xf32>
    %102 = arith.subf %101, %94 : vector<2x32xf32>
    %103 = arith.mulf %102, %100 : vector<2x32xf32>
    %104 = arith.mulf %94, %75 : vector<2x32xf32>
    %105 = arith.addf %103, %104 : vector<2x32xf32>
    %c4_37 = arith.constant 4 : index
    %c0_38 = arith.constant 0 : index
    %106 = vector.load %arg11[%c4_37, %c0_38] : memref<16x32xf32, #tpu.memory_space<vmem>>, vector<2x32xf32>
    tpu.vector_store %arg11[%c4_37, %c0_38], %105 {strides = array<i32>} : memref<16x32xf32, #tpu.memory_space<vmem>>, vector<2x32xf32>,
    %c6 = arith.constant 6 : index
    %c0_39 = arith.constant 0 : index
    %107 = vector.load %arg10[%c6, %c0_39] : memref<16x96xf32, #tpu.memory_space<vmem>>, vector<2x96xf32>
    %cst_40 = arith.constant dense<0.000000e+00> : vector<2x96xf32>
    %108 = tpu.matmul %105, %12, %cst_40 {dimension_numbers = #tpu.dot_dimension_numbers<[1], [0], [0], [1], [0, 0, 1, 1], [], []>} : vector<2x32xf32>, vector<32x96xf32>, vector<2x96xf32> -> vector<2x96xf32>
    %109 = vector.extract_strided_slice %107 {offsets = [0, 0], sizes = [2, 32], strides = [1, 1]} : vector<2x96xf32> to vector<2x32xf32>
    %110 = vector.extract_strided_slice %108 {offsets = [0, 0], sizes = [2, 32], strides = [1, 1]} : vector<2x96xf32> to vector<2x32xf32>
    %111 = arith.addf %109, %110 : vector<2x32xf32>
    %112 = arith.negf %111 : vector<2x32xf32>
    %113 = math.exp %112 : vector<2x32xf32>
    %cst_41 = arith.constant 1.000000e+00 : f32
    %114 = vector.broadcast %cst_41 : f32 to vector<2x32xf32>
    %115 = arith.addf %114, %113 : vector<2x32xf32>
    %116 = arith.divf %114, %115 : vector<2x32xf32>
    %117 = vector.extract_strided_slice %107 {offsets = [0, 32], sizes = [2, 32], strides = [1, 1]} : vector<2x96xf32> to vector<2x32xf32>
    %118 = vector.extract_strided_slice %108 {offsets = [0, 32], sizes = [2, 32], strides = [1, 1]} : vector<2x96xf32> to vector<2x32xf32>
    %119 = arith.addf %117, %118 : vector<2x32xf32>
    %120 = arith.negf %119 : vector<2x32xf32>
    %121 = math.exp %120 : vector<2x32xf32>
    %cst_42 = arith.constant 1.000000e+00 : f32
    %122 = vector.broadcast %cst_42 : f32 to vector<2x32xf32>
    %123 = arith.addf %122, %121 : vector<2x32xf32>
    %124 = arith.divf %122, %123 : vector<2x32xf32>
    %125 = vector.extract_strided_slice %107 {offsets = [0, 64], sizes = [2, 32], strides = [1, 1]} : vector<2x96xf32> to vector<2x32xf32>
    %126 = vector.extract_strided_slice %108 {offsets = [0, 64], sizes = [2, 32], strides = [1, 1]} : vector<2x96xf32> to vector<2x32xf32>
    %127 = arith.addf %126, %15 : vector<2x32xf32>
    %128 = arith.mulf %116, %127 : vector<2x32xf32>
    %129 = arith.addf %125, %128 : vector<2x32xf32>
    %130 = math.tanh %129 : vector<2x32xf32>
    %cst_43 = arith.constant 1.000000e+00 : f32
    %131 = vector.broadcast %cst_43 : f32 to vector<2x32xf32>
    %132 = arith.subf %131, %124 : vector<2x32xf32>
    %133 = arith.mulf %132, %130 : vector<2x32xf32>
    %134 = arith.mulf %124, %105 : vector<2x32xf32>
    %135 = arith.addf %133, %134 : vector<2x32xf32>
    %c6_44 = arith.constant 6 : index
    %c0_45 = arith.constant 0 : index
    %136 = vector.load %arg11[%c6_44, %c0_45] : memref<16x32xf32, #tpu.memory_space<vmem>>, vector<2x32xf32>
    tpu.vector_store %arg11[%c6_44, %c0_45], %135 {strides = array<i32>} : memref<16x32xf32, #tpu.memory_space<vmem>>, vector<2x32xf32>,
    %c8 = arith.constant 8 : index
    %c0_46 = arith.constant 0 : index
    %137 = vector.load %arg10[%c8, %c0_46] : memref<16x96xf32, #tpu.memory_space<vmem>>, vector<2x96xf32>
    %cst_47 = arith.constant dense<0.000000e+00> : vector<2x96xf32>
    %138 = tpu.matmul %135, %12, %cst_47 {dimension_numbers = #tpu.dot_dimension_numbers<[1], [0], [0], [1], [0, 0, 1, 1], [], []>} : vector<2x32xf32>, vector<32x96xf32>, vector<2x96xf32> -> vector<2x96xf32>
    %139 = vector.extract_strided_slice %137 {offsets = [0, 0], sizes = [2, 32], strides = [1, 1]} : vector<2x96xf32> to vector<2x32xf32>
    %140 = vector.extract_strided_slice %138 {offsets = [0, 0], sizes = [2, 32], strides = [1, 1]} : vector<2x96xf32> to vector<2x32xf32>
    %141 = arith.addf %139, %140 : vector<2x32xf32>
    %142 = arith.negf %141 : vector<2x32xf32>
    %143 = math.exp %142 : vector<2x32xf32>
    %cst_48 = arith.constant 1.000000e+00 : f32
    %144 = vector.broadcast %cst_48 : f32 to vector<2x32xf32>
    %145 = arith.addf %144, %143 : vector<2x32xf32>
    %146 = arith.divf %144, %145 : vector<2x32xf32>
    %147 = vector.extract_strided_slice %137 {offsets = [0, 32], sizes = [2, 32], strides = [1, 1]} : vector<2x96xf32> to vector<2x32xf32>
    %148 = vector.extract_strided_slice %138 {offsets = [0, 32], sizes = [2, 32], strides = [1, 1]} : vector<2x96xf32> to vector<2x32xf32>
    %149 = arith.addf %147, %148 : vector<2x32xf32>
    %150 = arith.negf %149 : vector<2x32xf32>
    %151 = math.exp %150 : vector<2x32xf32>
    %cst_49 = arith.constant 1.000000e+00 : f32
    %152 = vector.broadcast %cst_49 : f32 to vector<2x32xf32>
    %153 = arith.addf %152, %151 : vector<2x32xf32>
    %154 = arith.divf %152, %153 : vector<2x32xf32>
    %155 = vector.extract_strided_slice %137 {offsets = [0, 64], sizes = [2, 32], strides = [1, 1]} : vector<2x96xf32> to vector<2x32xf32>
    %156 = vector.extract_strided_slice %138 {offsets = [0, 64], sizes = [2, 32], strides = [1, 1]} : vector<2x96xf32> to vector<2x32xf32>
    %157 = arith.addf %156, %15 : vector<2x32xf32>
    %158 = arith.mulf %146, %157 : vector<2x32xf32>
    %159 = arith.addf %155, %158 : vector<2x32xf32>
    %160 = math.tanh %159 : vector<2x32xf32>
    %cst_50 = arith.constant 1.000000e+00 : f32
    %161 = vector.broadcast %cst_50 : f32 to vector<2x32xf32>
    %162 = arith.subf %161, %154 : vector<2x32xf32>
    %163 = arith.mulf %162, %160 : vector<2x32xf32>
    %164 = arith.mulf %154, %135 : vector<2x32xf32>
    %165 = arith.addf %163, %164 : vector<2x32xf32>
    %c8_51 = arith.constant 8 : index
    %c0_52 = arith.constant 0 : index
    %166 = vector.load %arg11[%c8_51, %c0_52] : memref<16x32xf32, #tpu.memory_space<vmem>>, vector<2x32xf32>
    tpu.vector_store %arg11[%c8_51, %c0_52], %165 {strides = array<i32>} : memref<16x32xf32, #tpu.memory_space<vmem>>, vector<2x32xf32>,
    %c10 = arith.constant 10 : index
    %c0_53 = arith.constant 0 : index
    %167 = vector.load %arg10[%c10, %c0_53] : memref<16x96xf32, #tpu.memory_space<vmem>>, vector<2x96xf32>
    %cst_54 = arith.constant dense<0.000000e+00> : vector<2x96xf32>
    %168 = tpu.matmul %165, %12, %cst_54 {dimension_numbers = #tpu.dot_dimension_numbers<[1], [0], [0], [1], [0, 0, 1, 1], [], []>} : vector<2x32xf32>, vector<32x96xf32>, vector<2x96xf32> -> vector<2x96xf32>
    %169 = vector.extract_strided_slice %167 {offsets = [0, 0], sizes = [2, 32], strides = [1, 1]} : vector<2x96xf32> to vector<2x32xf32>
    %170 = vector.extract_strided_slice %168 {offsets = [0, 0], sizes = [2, 32], strides = [1, 1]} : vector<2x96xf32> to vector<2x32xf32>
    %171 = arith.addf %169, %170 : vector<2x32xf32>
    %172 = arith.negf %171 : vector<2x32xf32>
    %173 = math.exp %172 : vector<2x32xf32>
    %cst_55 = arith.constant 1.000000e+00 : f32
    %174 = vector.broadcast %cst_55 : f32 to vector<2x32xf32>
    %175 = arith.addf %174, %173 : vector<2x32xf32>
    %176 = arith.divf %174, %175 : vector<2x32xf32>
    %177 = vector.extract_strided_slice %167 {offsets = [0, 32], sizes = [2, 32], strides = [1, 1]} : vector<2x96xf32> to vector<2x32xf32>
    %178 = vector.extract_strided_slice %168 {offsets = [0, 32], sizes = [2, 32], strides = [1, 1]} : vector<2x96xf32> to vector<2x32xf32>
    %179 = arith.addf %177, %178 : vector<2x32xf32>
    %180 = arith.negf %179 : vector<2x32xf32>
    %181 = math.exp %180 : vector<2x32xf32>
    %cst_56 = arith.constant 1.000000e+00 : f32
    %182 = vector.broadcast %cst_56 : f32 to vector<2x32xf32>
    %183 = arith.addf %182, %181 : vector<2x32xf32>
    %184 = arith.divf %182, %183 : vector<2x32xf32>
    %185 = vector.extract_strided_slice %167 {offsets = [0, 64], sizes = [2, 32], strides = [1, 1]} : vector<2x96xf32> to vector<2x32xf32>
    %186 = vector.extract_strided_slice %168 {offsets = [0, 64], sizes = [2, 32], strides = [1, 1]} : vector<2x96xf32> to vector<2x32xf32>
    %187 = arith.addf %186, %15 : vector<2x32xf32>
    %188 = arith.mulf %176, %187 : vector<2x32xf32>
    %189 = arith.addf %185, %188 : vector<2x32xf32>
    %190 = math.tanh %189 : vector<2x32xf32>
    %cst_57 = arith.constant 1.000000e+00 : f32
    %191 = vector.broadcast %cst_57 : f32 to vector<2x32xf32>
    %192 = arith.subf %191, %184 : vector<2x32xf32>
    %193 = arith.mulf %192, %190 : vector<2x32xf32>
    %194 = arith.mulf %184, %165 : vector<2x32xf32>
    %195 = arith.addf %193, %194 : vector<2x32xf32>
    %c10_58 = arith.constant 10 : index
    %c0_59 = arith.constant 0 : index
    %196 = vector.load %arg11[%c10_58, %c0_59] : memref<16x32xf32, #tpu.memory_space<vmem>>, vector<2x32xf32>
    tpu.vector_store %arg11[%c10_58, %c0_59], %195 {strides = array<i32>} : memref<16x32xf32, #tpu.memory_space<vmem>>, vector<2x32xf32>,
    %c12 = arith.constant 12 : index
    %c0_60 = arith.constant 0 : index
    %197 = vector.load %arg10[%c12, %c0_60] : memref<16x96xf32, #tpu.memory_space<vmem>>, vector<2x96xf32>
    %cst_61 = arith.constant dense<0.000000e+00> : vector<2x96xf32>
    %198 = tpu.matmul %195, %12, %cst_61 {dimension_numbers = #tpu.dot_dimension_numbers<[1], [0], [0], [1], [0, 0, 1, 1], [], []>} : vector<2x32xf32>, vector<32x96xf32>, vector<2x96xf32> -> vector<2x96xf32>
    %199 = vector.extract_strided_slice %197 {offsets = [0, 0], sizes = [2, 32], strides = [1, 1]} : vector<2x96xf32> to vector<2x32xf32>
    %200 = vector.extract_strided_slice %198 {offsets = [0, 0], sizes = [2, 32], strides = [1, 1]} : vector<2x96xf32> to vector<2x32xf32>
    %201 = arith.addf %199, %200 : vector<2x32xf32>
    %202 = arith.negf %201 : vector<2x32xf32>
    %203 = math.exp %202 : vector<2x32xf32>
    %cst_62 = arith.constant 1.000000e+00 : f32
    %204 = vector.broadcast %cst_62 : f32 to vector<2x32xf32>
    %205 = arith.addf %204, %203 : vector<2x32xf32>
    %206 = arith.divf %204, %205 : vector<2x32xf32>
    %207 = vector.extract_strided_slice %197 {offsets = [0, 32], sizes = [2, 32], strides = [1, 1]} : vector<2x96xf32> to vector<2x32xf32>
    %208 = vector.extract_strided_slice %198 {offsets = [0, 32], sizes = [2, 32], strides = [1, 1]} : vector<2x96xf32> to vector<2x32xf32>
    %209 = arith.addf %207, %208 : vector<2x32xf32>
    %210 = arith.negf %209 : vector<2x32xf32>
    %211 = math.exp %210 : vector<2x32xf32>
    %cst_63 = arith.constant 1.000000e+00 : f32
    %212 = vector.broadcast %cst_63 : f32 to vector<2x32xf32>
    %213 = arith.addf %212, %211 : vector<2x32xf32>
    %214 = arith.divf %212, %213 : vector<2x32xf32>
    %215 = vector.extract_strided_slice %197 {offsets = [0, 64], sizes = [2, 32], strides = [1, 1]} : vector<2x96xf32> to vector<2x32xf32>
    %216 = vector.extract_strided_slice %198 {offsets = [0, 64], sizes = [2, 32], strides = [1, 1]} : vector<2x96xf32> to vector<2x32xf32>
    %217 = arith.addf %216, %15 : vector<2x32xf32>
    %218 = arith.mulf %206, %217 : vector<2x32xf32>
    %219 = arith.addf %215, %218 : vector<2x32xf32>
    %220 = math.tanh %219 : vector<2x32xf32>
    %cst_64 = arith.constant 1.000000e+00 : f32
    %221 = vector.broadcast %cst_64 : f32 to vector<2x32xf32>
    %222 = arith.subf %221, %214 : vector<2x32xf32>
    %223 = arith.mulf %222, %220 : vector<2x32xf32>
    %224 = arith.mulf %214, %195 : vector<2x32xf32>
    %225 = arith.addf %223, %224 : vector<2x32xf32>
    %c12_65 = arith.constant 12 : index
    %c0_66 = arith.constant 0 : index
    %226 = vector.load %arg11[%c12_65, %c0_66] : memref<16x32xf32, #tpu.memory_space<vmem>>, vector<2x32xf32>
    tpu.vector_store %arg11[%c12_65, %c0_66], %225 {strides = array<i32>} : memref<16x32xf32, #tpu.memory_space<vmem>>, vector<2x32xf32>,
    %c14 = arith.constant 14 : index
    %c0_67 = arith.constant 0 : index
    %227 = vector.load %arg10[%c14, %c0_67] : memref<16x96xf32, #tpu.memory_space<vmem>>, vector<2x96xf32>
    %cst_68 = arith.constant dense<0.000000e+00> : vector<2x96xf32>
    %228 = tpu.matmul %225, %12, %cst_68 {dimension_numbers = #tpu.dot_dimension_numbers<[1], [0], [0], [1], [0, 0, 1, 1], [], []>} : vector<2x32xf32>, vector<32x96xf32>, vector<2x96xf32> -> vector<2x96xf32>
    %229 = vector.extract_strided_slice %227 {offsets = [0, 0], sizes = [2, 32], strides = [1, 1]} : vector<2x96xf32> to vector<2x32xf32>
    %230 = vector.extract_strided_slice %228 {offsets = [0, 0], sizes = [2, 32], strides = [1, 1]} : vector<2x96xf32> to vector<2x32xf32>
    %231 = arith.addf %229, %230 : vector<2x32xf32>
    %232 = arith.negf %231 : vector<2x32xf32>
    %233 = math.exp %232 : vector<2x32xf32>
    %cst_69 = arith.constant 1.000000e+00 : f32
    %234 = vector.broadcast %cst_69 : f32 to vector<2x32xf32>
    %235 = arith.addf %234, %233 : vector<2x32xf32>
    %236 = arith.divf %234, %235 : vector<2x32xf32>
    %237 = vector.extract_strided_slice %227 {offsets = [0, 32], sizes = [2, 32], strides = [1, 1]} : vector<2x96xf32> to vector<2x32xf32>
    %238 = vector.extract_strided_slice %228 {offsets = [0, 32], sizes = [2, 32], strides = [1, 1]} : vector<2x96xf32> to vector<2x32xf32>
    %239 = arith.addf %237, %238 : vector<2x32xf32>
    %240 = arith.negf %239 : vector<2x32xf32>
    %241 = math.exp %240 : vector<2x32xf32>
    %cst_70 = arith.constant 1.000000e+00 : f32
    %242 = vector.broadcast %cst_70 : f32 to vector<2x32xf32>
    %243 = arith.addf %242, %241 : vector<2x32xf32>
    %244 = arith.divf %242, %243 : vector<2x32xf32>
    %245 = vector.extract_strided_slice %227 {offsets = [0, 64], sizes = [2, 32], strides = [1, 1]} : vector<2x96xf32> to vector<2x32xf32>
    %246 = vector.extract_strided_slice %228 {offsets = [0, 64], sizes = [2, 32], strides = [1, 1]} : vector<2x96xf32> to vector<2x32xf32>
    %247 = arith.addf %246, %15 : vector<2x32xf32>
    %248 = arith.mulf %236, %247 : vector<2x32xf32>
    %249 = arith.addf %245, %248 : vector<2x32xf32>
    %250 = math.tanh %249 : vector<2x32xf32>
    %cst_71 = arith.constant 1.000000e+00 : f32
    %251 = vector.broadcast %cst_71 : f32 to vector<2x32xf32>
    %252 = arith.subf %251, %244 : vector<2x32xf32>
    %253 = arith.mulf %252, %250 : vector<2x32xf32>
    %254 = arith.mulf %244, %225 : vector<2x32xf32>
    %255 = arith.addf %253, %254 : vector<2x32xf32>
    %c14_72 = arith.constant 14 : index
    %c0_73 = arith.constant 0 : index
    %256 = vector.load %arg11[%c14_72, %c0_73] : memref<16x32xf32, #tpu.memory_space<vmem>>, vector<2x32xf32>
    tpu.vector_store %arg11[%c14_72, %c0_73], %255 {strides = array<i32>} : memref<16x32xf32, #tpu.memory_space<vmem>>, vector<2x32xf32>,
    %c0_74 = arith.constant 0 : index
    %c0_75 = arith.constant 0 : index
    %257 = vector.load %arg11[%c0_74, %c0_75] : memref<16x32xf32, #tpu.memory_space<vmem>>, vector<16x32xf32>
    %c0_76 = arith.constant 0 : index
    %c0_77 = arith.constant 0 : index
    %258 = vector.load %arg7[%c0_76, %c0_77] : memref<1x32xf32, #tpu.memory_space<vmem>>, vector<1x32xf32>
    %259 = vector.broadcast %258 : vector<1x32xf32> to vector<16x32xf32>
    %260 = arith.mulf %257, %259 : vector<16x32xf32>
    %cst_78 = arith.constant dense<0.000000e+00> : vector<16xf32>
    %261 = vector.multi_reduction <add>, %260, %cst_78 [1] : vector<16x32xf32> to vector<16xf32>
    %262 = vector.shape_cast %261 : vector<16xf32> to vector<16x1xf32>
    %c0_79 = arith.constant 0 : index
    %c0_80 = arith.constant 0 : index
    %263 = vector.load %arg8[%c0_79, %c0_80] : memref<1x1xf32, #tpu.memory_space<vmem>>, vector<1x1xf32>
    %264 = vector.broadcast %263 : vector<1x1xf32> to vector<16x1xf32>
    %265 = arith.addf %262, %264 : vector<16x1xf32>
    %c0_81 = arith.constant 0 : index
    %c0_82 = arith.constant 0 : index
    %266 = vector.load %arg9[%c0_81, %c0_82] : memref<16x1xf32, #tpu.memory_space<vmem>>, vector<16x1xf32>
    tpu.vector_store %arg9[%c0_81, %c0_82], %265 {strides = array<i32>} : memref<16x1xf32, #tpu.memory_space<vmem>>, vector<16x1xf32>,
    return
  }
}

</mosaic_0001>

<llo_original>
// kernel: tpu_custom_call.1
$region0: #{tpu_custom_call.1}
  #allocation0 [shape = 'u32[]', space=smem, size = 0x4, offset = 0x4, fixed_abs, tag = 'smem constant byte address 0x4 - core index']
  #allocation1 [shape = 'u32[144,128]{1,0:T(1,128)}', space=vmem, size = 0x12000, scoped, tag = 'internal scratch']
  #allocation2 [shape = 'f32[16,96]{1,0:T(8,128)}', space=vmem, size = 0x2000, scoped, tag = 'scratch operand']
  #allocation3 [shape = 'f32[16,32]{1,0:T(8,128)}', space=vmem, size = 0x2000, scoped, tag = 'scratch operand']
  #allocation4 [shape = 'f32[1,1]{1,0:T(1,128)S(1)}', space=vmem, size = 0x200, scoped, tag = 'scoped memory for tpu_custom_call.1']
  %s0 = inlined_call_operand.hbm [shape: f32[16,32], index: 0, kind: input, shape index: {}]
  %s1 = inlined_call_operand.hbm [shape: f32[32,32], index: 1, kind: input, shape index: {}]
  %s2 = inlined_call_operand.vmem [shape: f32[1,32], index: 2, kind: input, shape index: {}]
  %s3 = inlined_call_operand.hbm [shape: f32[32,96], index: 3, kind: input, shape index: {}]
  %s4 = inlined_call_operand.hbm [shape: f32[32,96], index: 4, kind: input, shape index: {}]
  %s5 = inlined_call_operand.vmem [shape: f32[1,96], index: 5, kind: input, shape index: {}]
  %s6 = inlined_call_operand.vmem [shape: f32[1,32], index: 6, kind: input, shape index: {}]
  %s7 = inlined_call_operand.vmem [shape: f32[1,32], index: 7, kind: input, shape index: {}]
  %s8 = inlined_call_operand.<no memory space> [shape: f32[1,1], index: 8, kind: input, shape index: {}]
  %s9 = inlined_call_operand.vmem [shape: f32[16,1], index: 9, kind: output, shape index: {}]
  %s10 = sld [smem:[#allocation0]]
  $region62: #{tpu_custom_call.1} parent=0
    _
  %s12 = ssub.s32 1, %s10
  %s13 = scalar_select 0, %s12, %s10
  %v14 = vstv %s8
  %15 = vst [vmem:[#allocation4] sm:$0x1] %v14
  $region1: #{tpu_custom_call.1} parent=0
    #allocation5 [shape = 'u8[8192]{0}', space=vmem, size = 0x2000, scoped, tag = 'input window, operand 0, single buffered']
    #allocation6 [shape = 's32[1]{0}', space=sflag, size = 0x4, scoped, tag = 'scoped memory for tpu_custom_call.1']
    #allocation7 [shape = 'u8[16384]{0}', space=vmem, size = 0x4000, scoped, tag = 'input window, operand 1, single buffered']
    #allocation8 [shape = 's32[1]{0}', space=sflag, size = 0x4, scoped, tag = 'scoped memory for tpu_custom_call.1']
    #allocation9 [shape = 'u8[16384]{0}', space=vmem, size = 0x4000, scoped, tag = 'input window, operand 3, single buffered']
    #allocation10 [shape = 'u8[16384]{0}', space=vmem, size = 0x4000, scoped, tag = 'input window, operand 4, single buffered']
    #allocation11 [shape = 's32[1]{0}', space=sflag, size = 0x4, scoped, tag = 'scoped memory for tpu_custom_call.1']
    %16 = vsyncpa [#allocation6], 0
    %17 = vsyncpa [#allocation8], 0
    %18 = vsyncpa [#allocation11], 0
    // Predicated region
    $region2: #{tpu_custom_call.1} parent=1 // pred_check
      _
    $region3: #{tpu_custom_call.1} parent=1 // pred_check_branch
      %20 = sbr.rel (0) target = $region5
    $region4: #{tpu_custom_call.1} parent=1 // pred_region
      %s22 = ssub.s32 256, 256
      %23 = vsyncadd [#allocation6], %s22
      %s24 = sshll.u32 [#allocation5], 4
      %s25 = int_to_ptr.vmem [resolvable:$true] %s24
      %30 = dma.hbm_to_vmem [thread:$0]  %s0, 256, %s25, [#allocation6], 128, 128, 8
    $region5: #{tpu_custom_call.1} parent=1 // pred_fallthru
      _
    // Predicated region
    $region6: #{tpu_custom_call.1} parent=1 // pred_check
      _
    $region7: #{tpu_custom_call.1} parent=1 // pred_check_branch
      %32 = sbr.rel (0) target = $region9
    $region8: #{tpu_custom_call.1} parent=1 // pred_region
      %s34 = ssub.s32 512, 512
      %35 = vsyncadd [#allocation8], %s34
      %s36 = sshll.u32 [#allocation7], 4
      %s37 = int_to_ptr.vmem [resolvable:$true] %s36
      %42 = dma.hbm_to_vmem [thread:$0]  %s1, 512, %s37, [#allocation8], 128, 128, 8
    $region9: #{tpu_custom_call.1} parent=1 // pred_fallthru
      _
    // Predicated region
    $region10: #{tpu_custom_call.1} parent=1 // pred_check
      _
    $region11: #{tpu_custom_call.1} parent=1 // pred_check_branch
      %44 = sbr.rel (0) target = $region13
    $region12: #{tpu_custom_call.1} parent=1 // pred_region
      _
    $region13: #{tpu_custom_call.1} parent=1 // pred_fallthru
      _
    // Predicated region
    $region14: #{tpu_custom_call.1} parent=1 // pred_check
      _
    $region15: #{tpu_custom_call.1} parent=1 // pred_check_branch
      %46 = sbr.rel (0) target = $region17
    $region16: #{tpu_custom_call.1} parent=1 // pred_region
      %s48 = ssub.s32 512, 512
      %49 = vsyncadd [#allocation8], %s48
      %s50 = sshll.u32 [#allocation9], 4
      %s51 = int_to_ptr.vmem [resolvable:$true] %s50
      %56 = dma.hbm_to_vmem [thread:$0]  %s3, 512, %s51, [#allocation8], 128, 128, 8
    $region17: #{tpu_custom_call.1} parent=1 // pred_fallthru
      _
    // Predicated region
    $region18: #{tpu_custom_call.1} parent=1 // pred_check
      _
    $region19: #{tpu_custom_call.1} parent=1 // pred_check_branch
      %58 = sbr.rel (0) target = $region21
    $region20: #{tpu_custom_call.1} parent=1 // pred_region
      %s60 = ssub.s32 512, 512
      %61 = vsyncadd [#allocation11], %s60
      %s62 = sshll.u32 [#allocation10], 4
      %s63 = int_to_ptr.vmem [resolvable:$true] %s62
      %68 = dma.hbm_to_vmem [thread:$0]  %s4, 512, %s63, [#allocation11], 128, 128, 8
    $region21: #{tpu_custom_call.1} parent=1 // pred_fallthru
      _
    // Predicated region
    $region22: #{tpu_custom_call.1} parent=1 // pred_check
      _
    $region23: #{tpu_custom_call.1} parent=1 // pred_check_branch
      %70 = sbr.rel (0) target = $region25
    $region24: #{tpu_custom_call.1} parent=1 // pred_region
      _
    $region25: #{tpu_custom_call.1} parent=1 // pred_fallthru
      _
    // Predicated region
    $region26: #{tpu_custom_call.1} parent=1 // pred_check
      _
    $region27: #{tpu_custom_call.1} parent=1 // pred_check_branch
      %72 = sbr.rel (0) target = $region29
    $region28: #{tpu_custom_call.1} parent=1 // pred_region
      _
    $region29: #{tpu_custom_call.1} parent=1 // pred_fallthru
      _
    // Predicated region
    $region30: #{tpu_custom_call.1} parent=1 // pred_check
      _
    $region31: #{tpu_custom_call.1} parent=1 // pred_check_branch
      %74 = sbr.rel (0) target = $region33
    $region32: #{tpu_custom_call.1} parent=1 // pred_region
      _
    $region33: #{tpu_custom_call.1} parent=1 // pred_fallthru
      _
    // Predicated region
    $region34: #{tpu_custom_call.1} parent=1 // pred_check
      _
    $region35: #{tpu_custom_call.1} parent=1 // pred_check_branch
      %76 = sbr.rel (0) target = $region37
    $region36: #{tpu_custom_call.1} parent=1 // pred_region
      _
    $region37: #{tpu_custom_call.1} parent=1 // pred_fallthru
      _
    // Predicated region
    $region38: #{tpu_custom_call.1} parent=1 // pred_check
      _
    $region39: #{tpu_custom_call.1} parent=1 // pred_check_branch
      %78 = sbr.rel (0) target = $region41
    $region40: #{tpu_custom_call.1} parent=1 // pred_region
      %79 = dma.done [#allocation6], 256
    $region41: #{tpu_custom_call.1} parent=1 // pred_fallthru
      _
    // Predicated region
    $region42: #{tpu_custom_call.1} parent=1 // pred_check
      _
    $region43: #{tpu_custom_call.1} parent=1 // pred_check_branch
      %81 = sbr.rel (0) target = $region45
    $region44: #{tpu_custom_call.1} parent=1 // pred_region
      %82 = dma.done [#allocation8], 512
    $region45: #{tpu_custom_call.1} parent=1 // pred_fallthru
      _
    // Predicated region
    $region46: #{tpu_custom_call.1} parent=1 // pred_check
      _
    $region47: #{tpu_custom_call.1} parent=1 // pred_check_branch
      %84 = sbr.rel (0) target = $region49
    $region48: #{tpu_custom_call.1} parent=1 // pred_region
      %85 = dma.done [#allocation8], 512
    $region49: #{tpu_custom_call.1} parent=1 // pred_fallthru
      _
    // Predicated region
    $region50: #{tpu_custom_call.1} parent=1 // pred_check
      _
    $region51: #{tpu_custom_call.1} parent=1 // pred_check_branch
      %87 = sbr.rel (0) target = $region53
    $region52: #{tpu_custom_call.1} parent=1 // pred_region
      %88 = dma.done [#allocation11], 512
    $region53: #{tpu_custom_call.1} parent=1 // pred_fallthru
      _
    %v89 = vld [vmem:[#allocation5] sm:$0xff]
    %v90 = vld [vmem:[#allocation5 + $0x8] sm:$0xff]
    %v91 = vld [vmem:[#allocation7] sm:$0xff]
    %v92 = vld [vmem:[#allocation7 + $0x8] sm:$0xff]
    %v93 = vld [vmem:[#allocation7 + $0x10] sm:$0xff]
    %v94 = vld [vmem:[#allocation7 + $0x18] sm:$0xff]
    %v95 = vld [vmem:[%s2] sm:$0x1]
    %v97 = vlaneseq
    %v98 = vshrl.u32 %v97, 7
    %v99 = vsub.s32 0, %v98
    %v100 = vrot.slane %v95, %v99
    %vm102 = vcmask 261120
    %v104 = vsel %vm102, %v89, 0
    %v107 = vsel %vm102, %v90, 0
    %109 = vmatprep.subr.mxu0 0.0
    %110 = vmatpush1.msra.mxu0 %v91
    %111 = vmatprep.subr.mxu0 0.0
    %112 = vmatpush1.msra.mxu0 %v92
    %113 = vmatprep.subr.mxu0 0.0
    %114 = vmatpush1.msra.mxu0 %v93
    %115 = vmatprep.subr.mxu0 0.0
    %116 = vmatpush1.msra.mxu0 %v94
    %117 = vmatprep.subr.mxu0 0.0
    %118 = vmatpush1.msra.mxu0 0.0
    %119 = vmatprep.subr.mxu0 0.0
    %120 = vmatpush1.msra.mxu0 0.0
    %121 = vmatprep.subr.mxu0 0.0
    %122 = vmatpush1.msra.mxu0 0.0
    %123 = vmatprep.subr.mxu0 0.0
    %124 = vmatpush1.msra.mxu0 0.0
    %125 = vmatprep.subr.mxu0 0.0
    %126 = vmatpush1.msra.mxu0 0.0
    %127 = vmatprep.subr.mxu0 0.0
    %128 = vmatpush1.msra.mxu0 0.0
    %129 = vmatprep.subr.mxu0 0.0
    %130 = vmatpush1.msra.mxu0 0.0
    %131 = vmatprep.subr.mxu0 0.0
    %132 = vmatpush1.msra.mxu0 0.0
    %133 = vmatprep.subr.mxu0 0.0
    %134 = vmatpush1.msra.mxu0 0.0
    %135 = vmatprep.subr.mxu0 0.0
    %136 = vmatpush1.msra.mxu0 0.0
    %137 = vmatprep.subr.mxu0 0.0
    %138 = vmatpush1.msra.mxu0 0.0
    %139 = vmatprep.subr.mxu0 0.0
    %140 = vmatpush1.msra.mxu0 0.0
    %141 = vmatprep.subr.mxu0 0.0
    %142 = vmatpush1.msra.mxu0 0.0
    %143 = vmatprep.subr.mxu0 0.0
    %144 = vmatpush1.msra.mxu0 0.0
    %145 = vmatprep.subr.mxu0 0.0
    %146 = vmatpush1.msra.mxu0 0.0
    %147 = vmatprep.subr.mxu0 0.0
    %148 = vmatpush1.msra.mxu0 0.0
    %149 = vmatprep.subr.mxu0 0.0
    %150 = vmatpush1.msra.mxu0 0.0
    %151 = vmatprep.subr.mxu0 0.0
    %152 = vmatpush1.msra.mxu0 0.0
    %153 = vmatprep.subr.mxu0 0.0
    %154 = vmatpush1.msra.mxu0 0.0
    %155 = vmatprep.subr.mxu0 0.0
    %156 = vmatpush1.msra.mxu0 0.0
    %157 = vmatprep.subr.mxu0 0.0
    %158 = vmatpush1.msra.mxu0 0.0
    %159 = vmatprep.subr.mxu0 0.0
    %160 = vmatpush1.msra.mxu0 0.0
    %161 = vmatprep.subr.mxu0 0.0
    %162 = vmatpush1.msra.mxu0 0.0
    %163 = vmatprep.subr.mxu0 0.0
    %164 = vmatpush1.msra.mxu0 0.0
    %165 = vmatprep.subr.mxu0 0.0
    %166 = vmatpush1.msra.mxu0 0.0
    %167 = vmatprep.subr.mxu0 0.0
    %168 = vmatpush1.msra.mxu0 0.0
    %169 = vmatprep.subr.mxu0 0.0
    %170 = vmatpush1.msra.mxu0 0.0
    %171 = vmatprep.subr.mxu0 0.0
    %172 = vmatpush1.msra.mxu0 0.0
    %173 = vmatprep.mubr.f32.mxu0 0.0
    %174 = vmatmul.mubr.f32.gmra.mrb[0].mxu0 %v104
    %v175 = vpop.f32.mrb[0].mxu0
    %v176 = vadd.f32 %v100, %v175
    %v177 = vpop.f32.mrb[0].mxu0
    %178 = vmatprep.mubr.f32.mxu0 0.0
    %179 = vmatmul.mubr.f32.gmra.mrb[0].mxu0 %v107
    %v180 = vpop.f32.mrb[0].mxu0
    %v181 = vadd.f32 %v100, %v180
    %v182 = vpop.f32.mrb[0].mxu0
    %183 = vdwg.mxu0
    %v184 = vld [vmem:[#allocation9] sm:$0xff]
    %v185 = vld [vmem:[#allocation9 + $0x8] sm:$0xff]
    %v186 = vld [vmem:[#allocation9 + $0x10] sm:$0xff]
    %v187 = vld [vmem:[#allocation9 + $0x18] sm:$0xff]
    %v188 = vld [vmem:[%s5] sm:$0x1]
    %v190 = vlaneseq
    %v191 = vshrl.u32 %v190, 7
    %v192 = vsub.s32 0, %v191
    %v193 = vrot.slane %v188, %v192
    %v196 = vsel %vm102, %v176, 0
    %v199 = vsel %vm102, %v181, 0
    %201 = vmatprep.subr.mxu0 0.0
    %202 = vmatpush1.msra.mxu0 %v184
    %203 = vmatprep.subr.mxu0 0.0
    %204 = vmatpush1.msra.mxu0 %v185
    %205 = vmatprep.subr.mxu0 0.0
    %206 = vmatpush1.msra.mxu0 %v186
    %207 = vmatprep.subr.mxu0 0.0
    %208 = vmatpush1.msra.mxu0 %v187
    %209 = vmatprep.subr.mxu0 0.0
    %210 = vmatpush1.msra.mxu0 0.0
    %211 = vmatprep.subr.mxu0 0.0
    %212 = vmatpush1.msra.mxu0 0.0
    %213 = vmatprep.subr.mxu0 0.0
    %214 = vmatpush1.msra.mxu0 0.0
    %215 = vmatprep.subr.mxu0 0.0
    %216 = vmatpush1.msra.mxu0 0.0
    %217 = vmatprep.subr.mxu0 0.0
    %218 = vmatpush1.msra.mxu0 0.0
    %219 = vmatprep.subr.mxu0 0.0
    %220 = vmatpush1.msra.mxu0 0.0
    %221 = vmatprep.subr.mxu0 0.0
    %222 = vmatpush1.msra.mxu0 0.0
    %223 = vmatprep.subr.mxu0 0.0
    %224 = vmatpush1.msra.mxu0 0.0
    %225 = vmatprep.subr.mxu0 0.0
    %226 = vmatpush1.msra.mxu0 0.0
    %227 = vmatprep.subr.mxu0 0.0
    %228 = vmatpush1.msra.mxu0 0.0
    %229 = vmatprep.subr.mxu0 0.0
    %230 = vmatpush1.msra.mxu0 0.0
    %231 = vmatprep.subr.mxu0 0.0
    %232 = vmatpush1.msra.mxu0 0.0
    %233 = vmatprep.subr.mxu0 0.0
    %234 = vmatpush1.msra.mxu0 0.0
    %235 = vmatprep.subr.mxu0 0.0
    %236 = vmatpush1.msra.mxu0 0.0
    %237 = vmatprep.subr.mxu0 0.0
    %238 = vmatpush1.msra.mxu0 0.0
    %239 = vmatprep.subr.mxu0 0.0
    %240 = vmatpush1.msra.mxu0 0.0
    %241 = vmatprep.subr.mxu0 0.0
    %242 = vmatpush1.msra.mxu0 0.0
    %243 = vmatprep.subr.mxu0 0.0
    %244 = vmatpush1.msra.mxu0 0.0
    %245 = vmatprep.subr.mxu0 0.0
    %246 = vmatpush1.msra.mxu0 0.0
    %247 = vmatprep.subr.mxu0 0.0
    %248 = vmatpush1.msra.mxu0 0.0
    %249 = vmatprep.subr.mxu0 0.0
    %250 = vmatpush1.msra.mxu0 0.0
    %251 = vmatprep.subr.mxu0 0.0
    %252 = vmatpush1.msra.mxu0 0.0
    %253 = vmatprep.subr.mxu0 0.0
    %254 = vmatpush1.msra.mxu0 0.0
    %255 = vmatprep.subr.mxu0 0.0
    %256 = vmatpush1.msra.mxu0 0.0
    %257 = vmatprep.subr.mxu0 0.0
    %258 = vmatpush1.msra.mxu0 0.0
    %259 = vmatprep.subr.mxu0 0.0
    %260 = vmatpush1.msra.mxu0 0.0
    %261 = vmatprep.subr.mxu0 0.0
    %262 = vmatpush1.msra.mxu0 0.0
    %263 = vmatprep.subr.mxu0 0.0
    %264 = vmatpush1.msra.mxu0 0.0
    %265 = vmatprep.mubr.f32.mxu0 0.0
    %266 = vmatmul.mubr.f32.gmra.mrb[0].mxu0 %v196
    %v267 = vpop.f32.mrb[0].mxu0
    %v268 = vadd.f32 %v193, %v267
    %v269 = vpop.f32.mrb[0].mxu0
    %270 = vmatprep.mubr.f32.mxu0 0.0
    %271 = vmatmul.mubr.f32.gmra.mrb[0].mxu0 %v199
    %v272 = vpop.f32.mrb[0].mxu0
    %v273 = vadd.f32 %v193, %v272
    %v274 = vpop.f32.mrb[0].mxu0
    %275 = vdwg.mxu0
    %vm276 = vcmask 785408
    %277 = vst.msk [vmem:[#allocation2] sm:$0xff] %vm276, %v268
    %278 = vst.msk [vmem:[#allocation2 + $0x8] sm:$0xff] %vm276, %v273
    %v279 = vld [vmem:[#allocation10] sm:$0xff]
    %v280 = vld [vmem:[#allocation10 + $0x8] sm:$0xff]
    %v281 = vld [vmem:[#allocation10 + $0x10] sm:$0xff]
    %v282 = vld [vmem:[#allocation10 + $0x18] sm:$0xff]
    %v283 = vld [vmem:[%s6] sm:$0x1]
    %v285 = vlaneseq
    %v286 = vshrl.u32 %v285, 7
    %v287 = vsub.s32 0, %v286
    %v288 = vrot.slane %v283, %v287
    %v289 = vld [vmem:[#allocation2] sm:$0x3]
    %v291 = vsel %vm102, 0.0, 0
    %293 = vmatprep.subr.mxu0 0.0
    %294 = vmatpush1.msra.mxu0 %v279
    %295 = vmatprep.subr.mxu0 0.0
    %296 = vmatpush1.msra.mxu0 %v280
    %297 = vmatprep.subr.mxu0 0.0
    %298 = vmatpush1.msra.mxu0 %v281
    %299 = vmatprep.subr.mxu0 0.0
    %300 = vmatpush1.msra.mxu0 %v282
    %301 = vmatprep.subr.mxu0 0.0
    %302 = vmatpush1.msra.mxu0 0.0
    %303 = vmatprep.subr.mxu0 0.0
    %304 = vmatpush1.msra.mxu0 0.0
    %305 = vmatprep.subr.mxu0 0.0
    %306 = vmatpush1.msra.mxu0 0.0
    %307 = vmatprep.subr.mxu0 0.0
    %308 = vmatpush1.msra.mxu0 0.0
    %309 = vmatprep.subr.mxu0 0.0
    %310 = vmatpush1.msra.mxu0 0.0
    %311 = vmatprep.subr.mxu0 0.0
    %312 = vmatpush1.msra.mxu0 0.0
    %313 = vmatprep.subr.mxu0 0.0
    %314 = vmatpush1.msra.mxu0 0.0
    %315 = vmatprep.subr.mxu0 0.0
    %316 = vmatpush1.msra.mxu0 0.0
    %317 = vmatprep.subr.mxu0 0.0
    %318 = vmatpush1.msra.mxu0 0.0
    %319 = vmatprep.subr.mxu0 0.0
    %320 = vmatpush1.msra.mxu0 0.0
    %321 = vmatprep.subr.mxu0 0.0
    %322 = vmatpush1.msra.mxu0 0.0
    %323 = vmatprep.subr.mxu0 0.0
    %324 = vmatpush1.msra.mxu0 0.0
    %325 = vmatprep.subr.mxu0 0.0
    %326 = vmatpush1.msra.mxu0 0.0
    %327 = vmatprep.subr.mxu0 0.0
    %328 = vmatpush1.msra.mxu0 0.0
    %329 = vmatprep.subr.mxu0 0.0
    %330 = vmatpush1.msra.mxu0 0.0
    %331 = vmatprep.subr.mxu0 0.0
    %332 = vmatpush1.msra.mxu0 0.0
    %333 = vmatprep.subr.mxu0 0.0
    %334 = vmatpush1.msra.mxu0 0.0
    %335 = vmatprep.subr.mxu0 0.0
    %336 = vmatpush1.msra.mxu0 0.0
    %337 = vmatprep.subr.mxu0 0.0
    %338 = vmatpush1.msra.mxu0 0.0
    %339 = vmatprep.subr.mxu0 0.0
    %340 = vmatpush1.msra.mxu0 0.0
    %341 = vmatprep.subr.mxu0 0.0
    %342 = vmatpush1.msra.mxu0 0.0
    %343 = vmatprep.subr.mxu0 0.0
    %344 = vmatpush1.msra.mxu0 0.0
    %345 = vmatprep.subr.mxu0 0.0
    %346 = vmatpush1.msra.mxu0 0.0
    %347 = vmatprep.subr.mxu0 0.0
    %348 = vmatpush1.msra.mxu0 0.0
    %349 = vmatprep.subr.mxu0 0.0
    %350 = vmatpush1.msra.mxu0 0.0
    %351 = vmatprep.subr.mxu0 0.0
    %352 = vmatpush1.msra.mxu0 0.0
    %353 = vmatprep.subr.mxu0 0.0
    %354 = vmatpush1.msra.mxu0 0.0
    %355 = vmatprep.subr.mxu0 0.0
    %356 = vmatpush1.msra.mxu0 0.0
    %357 = vmatprep.mubr.f32.mxu0 0.0
    %358 = vmatmul.mubr.f32.gmra.mrb[0].mxu0 %v291
    %v359 = vpop.f32.mrb[0].mxu0
    %v360 = vadd.f32 0.0, %v359
    %v361 = vpop.f32.mrb[0].mxu0
    %362 = vdwg.mxu0
    %v363 = vadd.f32 %v289, %v360
    %v364 = vxor.u32 %v363, 2147483648
    %v365 = vmul.f32 %v364, 1.442695
    %v366 = vpow.pop %v365
    %v367 = vadd.f32 %v366, 1.0
    %v368 = vrcp.pop %v367
    %v369 = vmul.f32 1.0, %v368
    %370 = vrot.lane.b32.xlu0 %v288, 64
    %v371 = vpop.permute.xlu0 %370
    %v373 = vadd.f32 %v360, %v371
    %375 = vrot.lane.b32.xlu0 %v373, 64
    %v376 = vpop.permute.xlu0 %375
    %v378 = vmul.f32 %v369, %v376
    %380 = vrot.lane.b32.xlu0 %v378, 64
    %v381 = vpop.permute.xlu0 %380
    %v383 = vadd.f32 %v289, %v381
    %v384 = vtanh.pop %v383
    %v385 = vsub.f32 1.0, %v369
    %387 = vrot.lane.b32.xlu0 %v384, 96
    %v388 = vpop.permute.xlu0 %387
    %v390 = vmul.f32 %v385, %v388
    %v391 = vmul.f32 %v369, 0.0
    %v392 = vadd.f32 %v390, %v391
    %394 = vrot.lane.b32.xlu0 %v392, 96
    %v395 = vpop.permute.xlu0 %394
    %vm397 = vcmask 254976
    %398 = vst.msk [vmem:[#allocation3] sm:$0x3] %vm397, %v395
    %v399 = vld [vmem:[#allocation2 + $0x2] sm:$0x3]
    %v400 = vsel %vm102, %v395, 0
    %402 = vmatprep.subr.mxu0 0.0
    %403 = vmatpush1.msra.mxu0 %v279
    %404 = vmatprep.subr.mxu0 0.0
    %405 = vmatpush1.msra.mxu0 %v280
    %406 = vmatprep.subr.mxu0 0.0
    %407 = vmatpush1.msra.mxu0 %v281
    %408 = vmatprep.subr.mxu0 0.0
    %409 = vmatpush1.msra.mxu0 %v282
    %410 = vmatprep.subr.mxu0 0.0
    %411 = vmatpush1.msra.mxu0 0.0
    %412 = vmatprep.subr.mxu0 0.0
    %413 = vmatpush1.msra.mxu0 0.0
    %414 = vmatprep.subr.mxu0 0.0
    %415 = vmatpush1.msra.mxu0 0.0
    %416 = vmatprep.subr.mxu0 0.0
    %417 = vmatpush1.msra.mxu0 0.0
    %418 = vmatprep.subr.mxu0 0.0
    %419 = vmatpush1.msra.mxu0 0.0
    %420 = vmatprep.subr.mxu0 0.0
    %421 = vmatpush1.msra.mxu0 0.0
    %422 = vmatprep.subr.mxu0 0.0
    %423 = vmatpush1.msra.mxu0 0.0
    %424 = vmatprep.subr.mxu0 0.0
    %425 = vmatpush1.msra.mxu0 0.0
    %426 = vmatprep.subr.mxu0 0.0
    %427 = vmatpush1.msra.mxu0 0.0
    %428 = vmatprep.subr.mxu0 0.0
    %429 = vmatpush1.msra.mxu0 0.0
    %430 = vmatprep.subr.mxu0 0.0
    %431 = vmatpush1.msra.mxu0 0.0
    %432 = vmatprep.subr.mxu0 0.0
    %433 = vmatpush1.msra.mxu0 0.0
    %434 = vmatprep.subr.mxu0 0.0
    %435 = vmatpush1.msra.mxu0 0.0
    %436 = vmatprep.subr.mxu0 0.0
    %437 = vmatpush1.msra.mxu0 0.0
    %438 = vmatprep.subr.mxu0 0.0
    %439 = vmatpush1.msra.mxu0 0.0
    %440 = vmatprep.subr.mxu0 0.0
    %441 = vmatpush1.msra.mxu0 0.0
    %442 = vmatprep.subr.mxu0 0.0
    %443 = vmatpush1.msra.mxu0 0.0
    %444 = vmatprep.subr.mxu0 0.0
    %445 = vmatpush1.msra.mxu0 0.0
    %446 = vmatprep.subr.mxu0 0.0
    %447 = vmatpush1.msra.mxu0 0.0
    %448 = vmatprep.subr.mxu0 0.0
    %449 = vmatpush1.msra.mxu0 0.0
    %450 = vmatprep.subr.mxu0 0.0
    %451 = vmatpush1.msra.mxu0 0.0
    %452 = vmatprep.subr.mxu0 0.0
    %453 = vmatpush1.msra.mxu0 0.0
    %454 = vmatprep.subr.mxu0 0.0
    %455 = vmatpush1.msra.mxu0 0.0
    %456 = vmatprep.subr.mxu0 0.0
    %457 = vmatpush1.msra.mxu0 0.0
    %458 = vmatprep.subr.mxu0 0.0
    %459 = vmatpush1.msra.mxu0 0.0
    %460 = vmatprep.subr.mxu0 0.0
    %461 = vmatpush1.msra.mxu0 0.0
    %462 = vmatprep.subr.mxu0 0.0
    %463 = vmatpush1.msra.mxu0 0.0
    %464 = vmatprep.subr.mxu0 0.0
    %465 = vmatpush1.msra.mxu0 0.0
    %466 = vmatprep.mubr.f32.mxu0 0.0
    %467 = vmatmul.mubr.f32.gmra.mrb[0].mxu0 %v400
    %v468 = vpop.f32.mrb[0].mxu0
    %v469 = vadd.f32 0.0, %v468
    %v470 = vpop.f32.mrb[0].mxu0
    %471 = vdwg.mxu0
    %v472 = vadd.f32 %v399, %v469
    %v473 = vxor.u32 %v472, 2147483648
    %v474 = vmul.f32 %v473, 1.442695
    %v475 = vpow.pop %v474
    %v476 = vadd.f32 %v475, 1.0
    %v477 = vrcp.pop %v476
    %v478 = vmul.f32 1.0, %v477
    %v479 = vadd.f32 %v469, %v371
    %481 = vrot.lane.b32.xlu0 %v479, 64
    %v482 = vpop.permute.xlu0 %481
    %v484 = vmul.f32 %v478, %v482
    %486 = vrot.lane.b32.xlu0 %v484, 64
    %v487 = vpop.permute.xlu0 %486
    %v489 = vadd.f32 %v399, %v487
    %v490 = vtanh.pop %v489
    %v491 = vsub.f32 1.0, %v478
    %493 = vrot.lane.b32.xlu0 %v490, 96
    %v494 = vpop.permute.xlu0 %493
    %v496 = vmul.f32 %v491, %v494
    %v497 = vmul.f32 %v478, %v392
    %v498 = vadd.f32 %v496, %v497
    %500 = vrot.lane.b32.xlu0 %v498, 96
    %v501 = vpop.permute.xlu0 %500
    %503 = vst.msk [vmem:[#allocation3 + $0x2] sm:$0x3] %vm397, %v501
    %v504 = vld [vmem:[#allocation2 + $0x4] sm:$0x3]
    %v505 = vsel %vm102, %v501, 0
    %507 = vmatprep.subr.mxu0 0.0
    %508 = vmatpush1.msra.mxu0 %v279
    %509 = vmatprep.subr.mxu0 0.0
    %510 = vmatpush1.msra.mxu0 %v280
    %511 = vmatprep.subr.mxu0 0.0
    %512 = vmatpush1.msra.mxu0 %v281
    %513 = vmatprep.subr.mxu0 0.0
    %514 = vmatpush1.msra.mxu0 %v282
    %515 = vmatprep.subr.mxu0 0.0
    %516 = vmatpush1.msra.mxu0 0.0
    %517 = vmatprep.subr.mxu0 0.0
    %518 = vmatpush1.msra.mxu0 0.0
    %519 = vmatprep.subr.mxu0 0.0
    %520 = vmatpush1.msra.mxu0 0.0
    %521 = vmatprep.subr.mxu0 0.0
    %522 = vmatpush1.msra.mxu0 0.0
    %523 = vmatprep.subr.mxu0 0.0
    %524 = vmatpush1.msra.mxu0 0.0
    %525 = vmatprep.subr.mxu0 0.0
    %526 = vmatpush1.msra.mxu0 0.0
    %527 = vmatprep.subr.mxu0 0.0
    %528 = vmatpush1.msra.mxu0 0.0
    %529 = vmatprep.subr.mxu0 0.0
    %530 = vmatpush1.msra.mxu0 0.0
    %531 = vmatprep.subr.mxu0 0.0
    %532 = vmatpush1.msra.mxu0 0.0
    %533 = vmatprep.subr.mxu0 0.0
    %534 = vmatpush1.msra.mxu0 0.0
    %535 = vmatprep.subr.mxu0 0.0
    %536 = vmatpush1.msra.mxu0 0.0
    %537 = vmatprep.subr.mxu0 0.0
    %538 = vmatpush1.msra.mxu0 0.0
    %539 = vmatprep.subr.mxu0 0.0
    %540 = vmatpush1.msra.mxu0 0.0
    %541 = vmatprep.subr.mxu0 0.0
    %542 = vmatpush1.msra.mxu0 0.0
    %543 = vmatprep.subr.mxu0 0.0
    %544 = vmatpush1.msra.mxu0 0.0
    %545 = vmatprep.subr.mxu0 0.0
    %546 = vmatpush1.msra.mxu0 0.0
    %547 = vmatprep.subr.mxu0 0.0
    %548 = vmatpush1.msra.mxu0 0.0
    %549 = vmatprep.subr.mxu0 0.0
    %550 = vmatpush1.msra.mxu0 0.0
    %551 = vmatprep.subr.mxu0 0.0
    %552 = vmatpush1.msra.mxu0 0.0
    %553 = vmatprep.subr.mxu0 0.0
    %554 = vmatpush1.msra.mxu0 0.0
    %555 = vmatprep.subr.mxu0 0.0
    %556 = vmatpush1.msra.mxu0 0.0
    %557 = vmatprep.subr.mxu0 0.0
    %558 = vmatpush1.msra.mxu0 0.0
    %559 = vmatprep.subr.mxu0 0.0
    %560 = vmatpush1.msra.mxu0 0.0
    %561 = vmatprep.subr.mxu0 0.0
    %562 = vmatpush1.msra.mxu0 0.0
    %563 = vmatprep.subr.mxu0 0.0
    %564 = vmatpush1.msra.mxu0 0.0
    %565 = vmatprep.subr.mxu0 0.0
    %566 = vmatpush1.msra.mxu0 0.0
    %567 = vmatprep.subr.mxu0 0.0
    %568 = vmatpush1.msra.mxu0 0.0
    %569 = vmatprep.subr.mxu0 0.0
    %570 = vmatpush1.msra.mxu0 0.0
    %571 = vmatprep.mubr.f32.mxu0 0.0
    %572 = vmatmul.mubr.f32.gmra.mrb[0].mxu0 %v505
    %v573 = vpop.f32.mrb[0].mxu0
    %v574 = vadd.f32 0.0, %v573
    %v575 = vpop.f32.mrb[0].mxu0
    %576 = vdwg.mxu0
    %v577 = vadd.f32 %v504, %v574
    %v578 = vxor.u32 %v577, 2147483648
    %v579 = vmul.f32 %v578, 1.442695
    %v580 = vpow.pop %v579
    %v581 = vadd.f32 %v580, 1.0
    %v582 = vrcp.pop %v581
    %v583 = vmul.f32 1.0, %v582
    %v584 = vadd.f32 %v574, %v371
    %586 = vrot.lane.b32.xlu0 %v584, 64
    %v587 = vpop.permute.xlu0 %586
    %v589 = vmul.f32 %v583, %v587
    %591 = vrot.lane.b32.xlu0 %v589, 64
    %v592 = vpop.permute.xlu0 %591
    %v594 = vadd.f32 %v504, %v592
    %v595 = vtanh.pop %v594
    %v596 = vsub.f32 1.0, %v583
    %598 = vrot.lane.b32.xlu0 %v595, 96
    %v599 = vpop.permute.xlu0 %598
    %v601 = vmul.f32 %v596, %v599
    %v602 = vmul.f32 %v583, %v498
    %v603 = vadd.f32 %v601, %v602
    %605 = vrot.lane.b32.xlu0 %v603, 96
    %v606 = vpop.permute.xlu0 %605
    %608 = vst.msk [vmem:[#allocation3 + $0x4] sm:$0x3] %vm397, %v606
    %v609 = vld [vmem:[#allocation2 + $0x6] sm:$0x3]
    %v610 = vsel %vm102, %v606, 0
    %612 = vmatprep.subr.mxu0 0.0
    %613 = vmatpush1.msra.mxu0 %v279
    %614 = vmatprep.subr.mxu0 0.0
    %615 = vmatpush1.msra.mxu0 %v280
    %616 = vmatprep.subr.mxu0 0.0
    %617 = vmatpush1.msra.mxu0 %v281
    %618 = vmatprep.subr.mxu0 0.0
    %619 = vmatpush1.msra.mxu0 %v282
    %620 = vmatprep.subr.mxu0 0.0
    %621 = vmatpush1.msra.mxu0 0.0
    %622 = vmatprep.subr.mxu0 0.0
    %623 = vmatpush1.msra.mxu0 0.0
    %624 = vmatprep.subr.mxu0 0.0
    %625 = vmatpush1.msra.mxu0 0.0
    %626 = vmatprep.subr.mxu0 0.0
    %627 = vmatpush1.msra.mxu0 0.0
    %628 = vmatprep.subr.mxu0 0.0
    %629 = vmatpush1.msra.mxu0 0.0
    %630 = vmatprep.subr.mxu0 0.0
    %631 = vmatpush1.msra.mxu0 0.0
    %632 = vmatprep.subr.mxu0 0.0
    %633 = vmatpush1.msra.mxu0 0.0
    %634 = vmatprep.subr.mxu0 0.0
    %635 = vmatpush1.msra.mxu0 0.0
    %636 = vmatprep.subr.mxu0 0.0
    %637 = vmatpush1.msra.mxu0 0.0
    %638 = vmatprep.subr.mxu0 0.0
    %639 = vmatpush1.msra.mxu0 0.0
    %640 = vmatprep.subr.mxu0 0.0
    %641 = vmatpush1.msra.mxu0 0.0
    %642 = vmatprep.subr.mxu0 0.0
    %643 = vmatpush1.msra.mxu0 0.0
    %644 = vmatprep.subr.mxu0 0.0
    %645 = vmatpush1.msra.mxu0 0.0
    %646 = vmatprep.subr.mxu0 0.0
    %647 = vmatpush1.msra.mxu0 0.0
    %648 = vmatprep.subr.mxu0 0.0
    %649 = vmatpush1.msra.mxu0 0.0
    %650 = vmatprep.subr.mxu0 0.0
    %651 = vmatpush1.msra.mxu0 0.0
    %652 = vmatprep.subr.mxu0 0.0
    %653 = vmatpush1.msra.mxu0 0.0
    %654 = vmatprep.subr.mxu0 0.0
    %655 = vmatpush1.msra.mxu0 0.0
    %656 = vmatprep.subr.mxu0 0.0
    %657 = vmatpush1.msra.mxu0 0.0
    %658 = vmatprep.subr.mxu0 0.0
    %659 = vmatpush1.msra.mxu0 0.0
    %660 = vmatprep.subr.mxu0 0.0
    %661 = vmatpush1.msra.mxu0 0.0
    %662 = vmatprep.subr.mxu0 0.0
    %663 = vmatpush1.msra.mxu0 0.0
    %664 = vmatprep.subr.mxu0 0.0
    %665 = vmatpush1.msra.mxu0 0.0
    %666 = vmatprep.subr.mxu0 0.0
    %667 = vmatpush1.msra.mxu0 0.0
    %668 = vmatprep.subr.mxu0 0.0
    %669 = vmatpush1.msra.mxu0 0.0
    %670 = vmatprep.subr.mxu0 0.0
    %671 = vmatpush1.msra.mxu0 0.0
    %672 = vmatprep.subr.mxu0 0.0
    %673 = vmatpush1.msra.mxu0 0.0
    %674 = vmatprep.subr.mxu0 0.0
    %675 = vmatpush1.msra.mxu0 0.0
    %676 = vmatprep.mubr.f32.mxu0 0.0
    %677 = vmatmul.mubr.f32.gmra.mrb[0].mxu0 %v610
    %v678 = vpop.f32.mrb[0].mxu0
    %v679 = vadd.f32 0.0, %v678
    %v680 = vpop.f32.mrb[0].mxu0
    %681 = vdwg.mxu0
    %v682 = vadd.f32 %v609, %v679
    %v683 = vxor.u32 %v682, 2147483648
    %v684 = vmul.f32 %v683, 1.442695
    %v685 = vpow.pop %v684
    %v686 = vadd.f32 %v685, 1.0
    %v687 = vrcp.pop %v686
    %v688 = vmul.f32 1.0, %v687
    %v689 = vadd.f32 %v679, %v371
    %691 = vrot.lane.b32.xlu0 %v689, 64
    %v692 = vpop.permute.xlu0 %691
    %v694 = vmul.f32 %v688, %v692
    %696 = vrot.lane.b32.xlu0 %v694, 64
    %v697 = vpop.permute.xlu0 %696
    %v699 = vadd.f32 %v609, %v697
    %v700 = vtanh.pop %v699
    %v701 = vsub.f32 1.0, %v688
    %703 = vrot.lane.b32.xlu0 %v700, 96
    %v704 = vpop.permute.xlu0 %703
    %v706 = vmul.f32 %v701, %v704
    %v707 = vmul.f32 %v688, %v603
    %v708 = vadd.f32 %v706, %v707
    %710 = vrot.lane.b32.xlu0 %v708, 96
    %v711 = vpop.permute.xlu0 %710
    %713 = vst.msk [vmem:[#allocation3 + $0x6] sm:$0x3] %vm397, %v711
    %v714 = vld [vmem:[#allocation2 + $0x8] sm:$0x3]
    %v715 = vsel %vm102, %v711, 0
    %717 = vmatprep.subr.mxu0 0.0
    %718 = vmatpush1.msra.mxu0 %v279
    %719 = vmatprep.subr.mxu0 0.0
    %720 = vmatpush1.msra.mxu0 %v280
    %721 = vmatprep.subr.mxu0 0.0
    %722 = vmatpush1.msra.mxu0 %v281
    %723 = vmatprep.subr.mxu0 0.0
    %724 = vmatpush1.msra.mxu0 %v282
    %725 = vmatprep.subr.mxu0 0.0
    %726 = vmatpush1.msra.mxu0 0.0
    %727 = vmatprep.subr.mxu0 0.0
    %728 = vmatpush1.msra.mxu0 0.0
    %729 = vmatprep.subr.mxu0 0.0
    %730 = vmatpush1.msra.mxu0 0.0
    %731 = vmatprep.subr.mxu0 0.0
    %732 = vmatpush1.msra.mxu0 0.0
    %733 = vmatprep.subr.mxu0 0.0
    %734 = vmatpush1.msra.mxu0 0.0
    %735 = vmatprep.subr.mxu0 0.0
    %736 = vmatpush1.msra.mxu0 0.0
    %737 = vmatprep.subr.mxu0 0.0
    %738 = vmatpush1.msra.mxu0 0.0
    %739 = vmatprep.subr.mxu0 0.0
    %740 = vmatpush1.msra.mxu0 0.0
    %741 = vmatprep.subr.mxu0 0.0
    %742 = vmatpush1.msra.mxu0 0.0
    %743 = vmatprep.subr.mxu0 0.0
    %744 = vmatpush1.msra.mxu0 0.0
    %745 = vmatprep.subr.mxu0 0.0
    %746 = vmatpush1.msra.mxu0 0.0
    %747 = vmatprep.subr.mxu0 0.0
    %748 = vmatpush1.msra.mxu0 0.0
    %749 = vmatprep.subr.mxu0 0.0
    %750 = vmatpush1.msra.mxu0 0.0
    %751 = vmatprep.subr.mxu0 0.0
    %752 = vmatpush1.msra.mxu0 0.0
    %753 = vmatprep.subr.mxu0 0.0
    %754 = vmatpush1.msra.mxu0 0.0
    %755 = vmatprep.subr.mxu0 0.0
    %756 = vmatpush1.msra.mxu0 0.0
    %757 = vmatprep.subr.mxu0 0.0
    %758 = vmatpush1.msra.mxu0 0.0
    %759 = vmatprep.subr.mxu0 0.0
    %760 = vmatpush1.msra.mxu0 0.0
    %761 = vmatprep.subr.mxu0 0.0
    %762 = vmatpush1.msra.mxu0 0.0
    %763 = vmatprep.subr.mxu0 0.0
    %764 = vmatpush1.msra.mxu0 0.0
    %765 = vmatprep.subr.mxu0 0.0
    %766 = vmatpush1.msra.mxu0 0.0
    %767 = vmatprep.subr.mxu0 0.0
    %768 = vmatpush1.msra.mxu0 0.0
    %769 = vmatprep.subr.mxu0 0.0
    %770 = vmatpush1.msra.mxu0 0.0
    %771 = vmatprep.subr.mxu0 0.0
    %772 = vmatpush1.msra.mxu0 0.0
    %773 = vmatprep.subr.mxu0 0.0
    %774 = vmatpush1.msra.mxu0 0.0
    %775 = vmatprep.subr.mxu0 0.0
    %776 = vmatpush1.msra.mxu0 0.0
    %777 = vmatprep.subr.mxu0 0.0
    %778 = vmatpush1.msra.mxu0 0.0
    %779 = vmatprep.subr.mxu0 0.0
    %780 = vmatpush1.msra.mxu0 0.0
    %781 = vmatprep.mubr.f32.mxu0 0.0
    %782 = vmatmul.mubr.f32.gmra.mrb[0].mxu0 %v715
    %v783 = vpop.f32.mrb[0].mxu0
    %v784 = vadd.f32 0.0, %v783
    %v785 = vpop.f32.mrb[0].mxu0
    %786 = vdwg.mxu0
    %v787 = vadd.f32 %v714, %v784
    %v788 = vxor.u32 %v787, 2147483648
    %v789 = vmul.f32 %v788, 1.442695
    %v790 = vpow.pop %v789
    %v791 = vadd.f32 %v790, 1.0
    %v792 = vrcp.pop %v791
    %v793 = vmul.f32 1.0, %v792
    %v794 = vadd.f32 %v784, %v371
    %796 = vrot.lane.b32.xlu0 %v794, 64
    %v797 = vpop.permute.xlu0 %796
    %v799 = vmul.f32 %v793, %v797
    %801 = vrot.lane.b32.xlu0 %v799, 64
    %v802 = vpop.permute.xlu0 %801
    %v804 = vadd.f32 %v714, %v802
    %v805 = vtanh.pop %v804
    %v806 = vsub.f32 1.0, %v793
    %808 = vrot.lane.b32.xlu0 %v805, 96
    %v809 = vpop.permute.xlu0 %808
    %v811 = vmul.f32 %v806, %v809
    %v812 = vmul.f32 %v793, %v708
    %v813 = vadd.f32 %v811, %v812
    %815 = vrot.lane.b32.xlu0 %v813, 96
    %v816 = vpop.permute.xlu0 %815
    %818 = vst.msk [vmem:[#allocation3 + $0x8] sm:$0x3] %vm397, %v816
    %v819 = vld [vmem:[#allocation2 + $0xa] sm:$0x3]
    %v820 = vsel %vm102, %v816, 0
    %822 = vmatprep.subr.mxu0 0.0
    %823 = vmatpush1.msra.mxu0 %v279
    %824 = vmatprep.subr.mxu0 0.0
    %825 = vmatpush1.msra.mxu0 %v280
    %826 = vmatprep.subr.mxu0 0.0
    %827 = vmatpush1.msra.mxu0 %v281
    %828 = vmatprep.subr.mxu0 0.0
    %829 = vmatpush1.msra.mxu0 %v282
    %830 = vmatprep.subr.mxu0 0.0
    %831 = vmatpush1.msra.mxu0 0.0
    %832 = vmatprep.subr.mxu0 0.0
    %833 = vmatpush1.msra.mxu0 0.0
    %834 = vmatprep.subr.mxu0 0.0
    %835 = vmatpush1.msra.mxu0 0.0
    %836 = vmatprep.subr.mxu0 0.0
    %837 = vmatpush1.msra.mxu0 0.0
    %838 = vmatprep.subr.mxu0 0.0
    %839 = vmatpush1.msra.mxu0 0.0
    %840 = vmatprep.subr.mxu0 0.0
    %841 = vmatpush1.msra.mxu0 0.0
    %842 = vmatprep.subr.mxu0 0.0
    %843 = vmatpush1.msra.mxu0 0.0
    %844 = vmatprep.subr.mxu0 0.0
    %845 = vmatpush1.msra.mxu0 0.0
    %846 = vmatprep.subr.mxu0 0.0
    %847 = vmatpush1.msra.mxu0 0.0
    %848 = vmatprep.subr.mxu0 0.0
    %849 = vmatpush1.msra.mxu0 0.0
    %850 = vmatprep.subr.mxu0 0.0
    %851 = vmatpush1.msra.mxu0 0.0
    %852 = vmatprep.subr.mxu0 0.0
    %853 = vmatpush1.msra.mxu0 0.0
    %854 = vmatprep.subr.mxu0 0.0
    %855 = vmatpush1.msra.mxu0 0.0
    %856 = vmatprep.subr.mxu0 0.0
    %857 = vmatpush1.msra.mxu0 0.0
    %858 = vmatprep.subr.mxu0 0.0
    %859 = vmatpush1.msra.mxu0 0.0
    %860 = vmatprep.subr.mxu0 0.0
    %861 = vmatpush1.msra.mxu0 0.0
    %862 = vmatprep.subr.mxu0 0.0
    %863 = vmatpush1.msra.mxu0 0.0
    %864 = vmatprep.subr.mxu0 0.0
    %865 = vmatpush1.msra.mxu0 0.0
    %866 = vmatprep.subr.mxu0 0.0
    %867 = vmatpush1.msra.mxu0 0.0
    %868 = vmatprep.subr.mxu0 0.0
    %869 = vmatpush1.msra.mxu0 0.0
    %870 = vmatprep.subr.mxu0 0.0
    %871 = vmatpush1.msra.mxu0 0.0
    %872 = vmatprep.subr.mxu0 0.0
    %873 = vmatpush1.msra.mxu0 0.0
    %874 = vmatprep.subr.mxu0 0.0
    %875 = vmatpush1.msra.mxu0 0.0
    %876 = vmatprep.subr.mxu0 0.0
    %877 = vmatpush1.msra.mxu0 0.0
    %878 = vmatprep.subr.mxu0 0.0
    %879 = vmatpush1.msra.mxu0 0.0
    %880 = vmatprep.subr.mxu0 0.0
    %881 = vmatpush1.msra.mxu0 0.0
    %882 = vmatprep.subr.mxu0 0.0
    %883 = vmatpush1.msra.mxu0 0.0
    %884 = vmatprep.subr.mxu0 0.0
    %885 = vmatpush1.msra.mxu0 0.0
    %886 = vmatprep.mubr.f32.mxu0 0.0
    %887 = vmatmul.mubr.f32.gmra.mrb[0].mxu0 %v820
    %v888 = vpop.f32.mrb[0].mxu0
    %v889 = vadd.f32 0.0, %v888
    %v890 = vpop.f32.mrb[0].mxu0
    %891 = vdwg.mxu0
    %v892 = vadd.f32 %v819, %v889
    %v893 = vxor.u32 %v892, 2147483648
    %v894 = vmul.f32 %v893, 1.442695
    %v895 = vpow.pop %v894
    %v896 = vadd.f32 %v895, 1.0
    %v897 = vrcp.pop %v896
    %v898 = vmul.f32 1.0, %v897
    %v899 = vadd.f32 %v889, %v371
    %901 = vrot.lane.b32.xlu0 %v899, 64
    %v902 = vpop.permute.xlu0 %901
    %v904 = vmul.f32 %v898, %v902
    %906 = vrot.lane.b32.xlu0 %v904, 64
    %v907 = vpop.permute.xlu0 %906
    %v909 = vadd.f32 %v819, %v907
    %v910 = vtanh.pop %v909
    %v911 = vsub.f32 1.0, %v898
    %913 = vrot.lane.b32.xlu0 %v910, 96
    %v914 = vpop.permute.xlu0 %913
    %v916 = vmul.f32 %v911, %v914
    %v917 = vmul.f32 %v898, %v813
    %v918 = vadd.f32 %v916, %v917
    %920 = vrot.lane.b32.xlu0 %v918, 96
    %v921 = vpop.permute.xlu0 %920
    %923 = vst.msk [vmem:[#allocation3 + $0xa] sm:$0x3] %vm397, %v921
    %v924 = vld [vmem:[#allocation2 + $0xc] sm:$0x3]
    %v925 = vsel %vm102, %v921, 0
    %927 = vmatprep.subr.mxu0 0.0
    %928 = vmatpush1.msra.mxu0 %v279
    %929 = vmatprep.subr.mxu0 0.0
    %930 = vmatpush1.msra.mxu0 %v280
    %931 = vmatprep.subr.mxu0 0.0
    %932 = vmatpush1.msra.mxu0 %v281
    %933 = vmatprep.subr.mxu0 0.0
    %934 = vmatpush1.msra.mxu0 %v282
    %935 = vmatprep.subr.mxu0 0.0
    %936 = vmatpush1.msra.mxu0 0.0
    %937 = vmatprep.subr.mxu0 0.0
    %938 = vmatpush1.msra.mxu0 0.0
    %939 = vmatprep.subr.mxu0 0.0
    %940 = vmatpush1.msra.mxu0 0.0
    %941 = vmatprep.subr.mxu0 0.0
    %942 = vmatpush1.msra.mxu0 0.0
    %943 = vmatprep.subr.mxu0 0.0
    %944 = vmatpush1.msra.mxu0 0.0
    %945 = vmatprep.subr.mxu0 0.0
    %946 = vmatpush1.msra.mxu0 0.0
    %947 = vmatprep.subr.mxu0 0.0
    %948 = vmatpush1.msra.mxu0 0.0
    %949 = vmatprep.subr.mxu0 0.0
    %950 = vmatpush1.msra.mxu0 0.0
    %951 = vmatprep.subr.mxu0 0.0
    %952 = vmatpush1.msra.mxu0 0.0
    %953 = vmatprep.subr.mxu0 0.0
    %954 = vmatpush1.msra.mxu0 0.0
    %955 = vmatprep.subr.mxu0 0.0
    %956 = vmatpush1.msra.mxu0 0.0
    %957 = vmatprep.subr.mxu0 0.0
    %958 = vmatpush1.msra.mxu0 0.0
    %959 = vmatprep.subr.mxu0 0.0
    %960 = vmatpush1.msra.mxu0 0.0
    %961 = vmatprep.subr.mxu0 0.0
    %962 = vmatpush1.msra.mxu0 0.0
    %963 = vmatprep.subr.mxu0 0.0
    %964 = vmatpush1.msra.mxu0 0.0
    %965 = vmatprep.subr.mxu0 0.0
    %966 = vmatpush1.msra.mxu0 0.0
    %967 = vmatprep.subr.mxu0 0.0
    %968 = vmatpush1.msra.mxu0 0.0
    %969 = vmatprep.subr.mxu0 0.0
    %970 = vmatpush1.msra.mxu0 0.0
    %971 = vmatprep.subr.mxu0 0.0
    %972 = vmatpush1.msra.mxu0 0.0
    %973 = vmatprep.subr.mxu0 0.0
    %974 = vmatpush1.msra.mxu0 0.0
    %975 = vmatprep.subr.mxu0 0.0
    %976 = vmatpush1.msra.mxu0 0.0
    %977 = vmatprep.subr.mxu0 0.0
    %978 = vmatpush1.msra.mxu0 0.0
    %979 = vmatprep.subr.mxu0 0.0
    %980 = vmatpush1.msra.mxu0 0.0
    %981 = vmatprep.subr.mxu0 0.0
    %982 = vmatpush1.msra.mxu0 0.0
    %983 = vmatprep.subr.mxu0 0.0
    %984 = vmatpush1.msra.mxu0 0.0
    %985 = vmatprep.subr.mxu0 0.0
    %986 = vmatpush1.msra.mxu0 0.0
    %987 = vmatprep.subr.mxu0 0.0
    %988 = vmatpush1.msra.mxu0 0.0
    %989 = vmatprep.subr.mxu0 0.0
    %990 = vmatpush1.msra.mxu0 0.0
    %991 = vmatprep.mubr.f32.mxu0 0.0
    %992 = vmatmul.mubr.f32.gmra.mrb[0].mxu0 %v925
    %v993 = vpop.f32.mrb[0].mxu0
    %v994 = vadd.f32 0.0, %v993
    %v995 = vpop.f32.mrb[0].mxu0
    %996 = vdwg.mxu0
    %v997 = vadd.f32 %v924, %v994
    %v998 = vxor.u32 %v997, 2147483648
    %v999 = vmul.f32 %v998, 1.442695
    %v1000 = vpow.pop %v999
    %v1001 = vadd.f32 %v1000, 1.0
    %v1002 = vrcp.pop %v1001
    %v1003 = vmul.f32 1.0, %v1002
    %v1004 = vadd.f32 %v994, %v371
    %1006 = vrot.lane.b32.xlu0 %v1004, 64
    %v1007 = vpop.permute.xlu0 %1006
    %v1009 = vmul.f32 %v1003, %v1007
    %1011 = vrot.lane.b32.xlu0 %v1009, 64
    %v1012 = vpop.permute.xlu0 %1011
    %v1014 = vadd.f32 %v924, %v1012
    %v1015 = vtanh.pop %v1014
    %v1016 = vsub.f32 1.0, %v1003
    %1018 = vrot.lane.b32.xlu0 %v1015, 96
    %v1019 = vpop.permute.xlu0 %1018
    %v1021 = vmul.f32 %v1016, %v1019
    %v1022 = vmul.f32 %v1003, %v918
    %v1023 = vadd.f32 %v1021, %v1022
    %1025 = vrot.lane.b32.xlu0 %v1023, 96
    %v1026 = vpop.permute.xlu0 %1025
    %1028 = vst.msk [vmem:[#allocation3 + $0xc] sm:$0x3] %vm397, %v1026
    %v1029 = vld [vmem:[#allocation2 + $0xe] sm:$0x3]
    %v1030 = vsel %vm102, %v1026, 0
    %1032 = vmatprep.subr.mxu0 0.0
    %1033 = vmatpush1.msra.mxu0 %v279
    %1034 = vmatprep.subr.mxu0 0.0
    %1035 = vmatpush1.msra.mxu0 %v280
    %1036 = vmatprep.subr.mxu0 0.0
    %1037 = vmatpush1.msra.mxu0 %v281
    %1038 = vmatprep.subr.mxu0 0.0
    %1039 = vmatpush1.msra.mxu0 %v282
    %1040 = vmatprep.subr.mxu0 0.0
    %1041 = vmatpush1.msra.mxu0 0.0
    %1042 = vmatprep.subr.mxu0 0.0
    %1043 = vmatpush1.msra.mxu0 0.0
    %1044 = vmatprep.subr.mxu0 0.0
    %1045 = vmatpush1.msra.mxu0 0.0
    %1046 = vmatprep.subr.mxu0 0.0
    %1047 = vmatpush1.msra.mxu0 0.0
    %1048 = vmatprep.subr.mxu0 0.0
    %1049 = vmatpush1.msra.mxu0 0.0
    %1050 = vmatprep.subr.mxu0 0.0
    %1051 = vmatpush1.msra.mxu0 0.0
    %1052 = vmatprep.subr.mxu0 0.0
    %1053 = vmatpush1.msra.mxu0 0.0
    %1054 = vmatprep.subr.mxu0 0.0
    %1055 = vmatpush1.msra.mxu0 0.0
    %1056 = vmatprep.subr.mxu0 0.0
    %1057 = vmatpush1.msra.mxu0 0.0
    %1058 = vmatprep.subr.mxu0 0.0
    %1059 = vmatpush1.msra.mxu0 0.0
    %1060 = vmatprep.subr.mxu0 0.0
    %1061 = vmatpush1.msra.mxu0 0.0
    %1062 = vmatprep.subr.mxu0 0.0
    %1063 = vmatpush1.msra.mxu0 0.0
    %1064 = vmatprep.subr.mxu0 0.0
    %1065 = vmatpush1.msra.mxu0 0.0
    %1066 = vmatprep.subr.mxu0 0.0
    %1067 = vmatpush1.msra.mxu0 0.0
    %1068 = vmatprep.subr.mxu0 0.0
    %1069 = vmatpush1.msra.mxu0 0.0
    %1070 = vmatprep.subr.mxu0 0.0
    %1071 = vmatpush1.msra.mxu0 0.0
    %1072 = vmatprep.subr.mxu0 0.0
    %1073 = vmatpush1.msra.mxu0 0.0
    %1074 = vmatprep.subr.mxu0 0.0
    %1075 = vmatpush1.msra.mxu0 0.0
    %1076 = vmatprep.subr.mxu0 0.0
    %1077 = vmatpush1.msra.mxu0 0.0
    %1078 = vmatprep.subr.mxu0 0.0
    %1079 = vmatpush1.msra.mxu0 0.0
    %1080 = vmatprep.subr.mxu0 0.0
    %1081 = vmatpush1.msra.mxu0 0.0
    %1082 = vmatprep.subr.mxu0 0.0
    %1083 = vmatpush1.msra.mxu0 0.0
    %1084 = vmatprep.subr.mxu0 0.0
    %1085 = vmatpush1.msra.mxu0 0.0
    %1086 = vmatprep.subr.mxu0 0.0
    %1087 = vmatpush1.msra.mxu0 0.0
    %1088 = vmatprep.subr.mxu0 0.0
    %1089 = vmatpush1.msra.mxu0 0.0
    %1090 = vmatprep.subr.mxu0 0.0
    %1091 = vmatpush1.msra.mxu0 0.0
    %1092 = vmatprep.subr.mxu0 0.0
    %1093 = vmatpush1.msra.mxu0 0.0
    %1094 = vmatprep.subr.mxu0 0.0
    %1095 = vmatpush1.msra.mxu0 0.0
    %1096 = vmatprep.mubr.f32.mxu0 0.0
    %1097 = vmatmul.mubr.f32.gmra.mrb[0].mxu0 %v1030
    %v1098 = vpop.f32.mrb[0].mxu0
    %v1099 = vadd.f32 0.0, %v1098
    %v1100 = vpop.f32.mrb[0].mxu0
    %1101 = vdwg.mxu0
    %v1102 = vadd.f32 %v1029, %v1099
    %v1103 = vxor.u32 %v1102, 2147483648
    %v1104 = vmul.f32 %v1103, 1.442695
    %v1105 = vpow.pop %v1104
    %v1106 = vadd.f32 %v1105, 1.0
    %v1107 = vrcp.pop %v1106
    %v1108 = vmul.f32 1.0, %v1107
    %v1109 = vadd.f32 %v1099, %v371
    %1111 = vrot.lane.b32.xlu0 %v1109, 64
    %v1112 = vpop.permute.xlu0 %1111
    %v1114 = vmul.f32 %v1108, %v1112
    %1116 = vrot.lane.b32.xlu0 %v1114, 64
    %v1117 = vpop.permute.xlu0 %1116
    %v1119 = vadd.f32 %v1029, %v1117
    %v1120 = vtanh.pop %v1119
    %v1121 = vsub.f32 1.0, %v1108
    %1123 = vrot.lane.b32.xlu0 %v1120, 96
    %v1124 = vpop.permute.xlu0 %1123
    %v1126 = vmul.f32 %v1121, %v1124
    %v1127 = vmul.f32 %v1108, %v1023
    %v1128 = vadd.f32 %v1126, %v1127
    %1130 = vrot.lane.b32.xlu0 %v1128, 96
    %v1131 = vpop.permute.xlu0 %1130
    %1133 = vst.msk [vmem:[#allocation3 + $0xe] sm:$0x3] %vm397, %v1131
    %v1134 = vld [vmem:[#allocation3] sm:$0xff]
    %v1135 = vld [vmem:[#allocation3 + $0x8] sm:$0xff]
    %v1136 = vld [vmem:[%s7] sm:$0x1]
    %v1138 = vlaneseq
    %v1139 = vshrl.u32 %v1138, 7
    %v1140 = vsub.s32 0, %v1139
    %v1141 = vrot.slane %v1136, %v1140
    %v1143 = vmul.f32 %v1134, %v1141
    %v1144 = vmul.f32 %v1135, %v1141
    %v1145 = vsel %vm102, %v1143, 0.0
    %1146 = vadd.xlane.f32.xlu0 %v1145
    %v1147 = vpop.xlane.xlu0 %1146
    %v1148 = vsel %vm102, %v1144, 0.0
    %1149 = vadd.xlane.f32.xlu0 %v1148
    %v1150 = vpop.xlane.xlu0 %1149
    %v1151 = vld [vmem:[#allocation4] sm:$0x1]
    %v1153 = vlaneseq
    %v1154 = vshrl.u32 %v1153, 7
    %v1155 = vsub.s32 0, %v1154
    %v1156 = vrot.slane %v1151, %v1155
    %v1158 = vadd.f32 %v1147, %v1156
    %v1159 = vadd.f32 %v1150, %v1156
    %vm1160 = vcmask 7168
    %1161 = vst.msk [vmem:[%s9] sm:$0xff] %vm1160, %v1158
    %1162 = vst.msk [vmem:[%s9 + $0x8] sm:$0xff] %vm1160, %v1159
    // Predicated region
    $region54: #{tpu_custom_call.1} parent=1 // pred_check
      _
    $region55: #{tpu_custom_call.1} parent=1 // pred_check_branch
      %1164 = sbr.rel (0) target = $region57
    $region56: #{tpu_custom_call.1} parent=1 // pred_region
      _
    $region57: #{tpu_custom_call.1} parent=1 // pred_fallthru
      _
    // Predicated region
    $region58: #{tpu_custom_call.1} parent=1 // pred_check
      _
    $region59: #{tpu_custom_call.1} parent=1 // pred_check_branch
      %1166 = sbr.rel (0) target = $region61
    $region60: #{tpu_custom_call.1} parent=1 // pred_region
      _
    $region61: #{tpu_custom_call.1} parent=1 // pred_fallthru
      _
    %1167 = vsyncpa [#allocation6], 1
    %1168 = vsyncpa [#allocation8], 1
    %1169 = vsyncpa [#allocation11], 1

</llo_original>
